<compile_context>
chip_gen: v5e
topology: v5e:2x2
jax: 0.10.0
libtpu: 0.0.40
codegen_flags: <defaults>
</compile_context>

<pallas_src>
import functools
import math

import jax
import jax.numpy as jnp
from jax import lax
from jax.experimental import pallas as pl
from jax.experimental.pallas import tpu as pltpu

# -------------------- small XLNet-style config (lane-dense) --------------------
VOCAB = 64
D_MODEL = 128          # real XLNet-base: 768; 128 keeps the lane axis dense
N_HEAD = 2
D_HEAD = 64
HD = N_HEAD * D_HEAD   # 128
D_INNER = 256
N_LAYER = 2
NUM_LABELS = 4
LN_EPS = 1e-12         # XLNet layer_norm_eps

# packed-operand layout constants
KR_ROWS = 128              # rel-pos table zero-padded to one full lane tile of rows
QKV_COLS = 3 * HD          # 384
W1_OFF = QKV_COLS          # W1 columns start here in the w_in slab
KR_OFF = QKV_COLS + D_INNER  # projected positional keys start here (640)


# ------------------------------ in-kernel helpers ------------------------------

def _layernorm(x, g, b):
    mu = jnp.mean(x, axis=-1, keepdims=True)
    var = jnp.mean((x - mu) * (x - mu), axis=-1, keepdims=True)
    return (x - mu) * lax.rsqrt(var + LN_EPS) * g + b


# --------------------------------- fused kernel --------------------------------

def _xlnet_fused_kernel(B, S, x0_ref, w_in_ref, w_out_ref, vecs_ref, clf_ref, o_ref):
    BS = B * S
    scale = jnp.float32(1.0 / math.sqrt(D_HEAD))
    bf16 = jnp.bfloat16

    # ---- loop-invariant loads (hoisted once) ----
    h = x0_ref[0:BS, :]                              # (BS, D) f32 embeddings
    add_mask = x0_ref[BS:2 * BS, 0:BS]               # (BS, BS) additive: 0 / -1e9
    pool = x0_ref[2 * BS:2 * BS + B, 0:BS]           # (B, BS) per-batch mean matrix

    for l in range(N_LAYER):                         # static unroll (N_LAYER = 2)
        # ---- fused Q|K|V projection: one MXU launch, bf16 operands / f32 acc ----
        qkv = jnp.dot(h.astype(bf16), w_in_ref[l, :, 0:QKV_COLS],
                      preferred_element_type=jnp.float32)          # (BS, 3*HD)

        attn_out = None
        for hd in range(N_HEAD):                     # H = 2, static lane slices only
            c0, c1 = hd * D_HEAD, (hd + 1) * D_HEAD
            qh = qkv[:, c0:c1]                       # (BS, Dh)
            kh = qkv[:, HD + c0:HD + c1]
            vh = qkv[:, 2 * HD + c0:2 * HD + c1]
            rwb = vecs_ref[l, 0:1, c0:c1]            # (1, Dh) r_w_bias (head hd)
            rrb = vecs_ref[l, 1:2, c0:c1]            # (1, Dh) r_r_bias (head hd)

            # content term for ALL batches at once; cross-batch entries masked below
            ac = lax.dot_general((qh + rwb).astype(bf16), kh.astype(bf16),
                                 (((1,), (1,)), ((), ())),
                                 preferred_element_type=jnp.float32)   # (BS, BS)

            # positional term: (q + r_r_bias) @ (W_r pe)^T over the 128-row padded
            # table, then XLNet rel_shift as ONE strided lane-rotate:
            #   row r is rotated by (r - S) mod 128  ->  out[r, c] = bd_full[r, S - i + j]
            # for in-block columns (r = b*S+i, c = b*S+j); off-block garbage is masked.
            bd_full = lax.dot_general((qh + rrb).astype(bf16),
                                      w_in_ref[l, :, KR_OFF + c0:KR_OFF + c1],
                                      (((1,), (1,)), ((), ())),
                                      preferred_element_type=jnp.float32)  # (BS, 128)
            bd = pltpu.roll(bd_full, shift=KR_ROWS - S, axis=1,
                            stride=1, stride_axis=0)[:, 0:BS]              # (BS, BS)

            score = (ac + bd) * scale + add_mask
            score = score - jnp.max(score, axis=-1, keepdims=True)
            p = jnp.exp(score)
            p = p * pl.reciprocal(jnp.sum(p, axis=-1, keepdims=True), approx=True)

            ctx = jnp.dot(p.astype(bf16), vh.astype(bf16),
                          preferred_element_type=jnp.float32)               # (BS, Dh)
            # head recombination as sum of per-head output projections (no concat)
            part = jnp.dot(ctx.astype(bf16), w_out_ref[l, c0:c1, :],
                           preferred_element_type=jnp.float32)              # (BS, D)
            attn_out = part if attn_out is None else attn_out + part

        # ---- residual + post-LN ----
        h = _layernorm(attn_out + h,
                       vecs_ref[l, 2:3, 0:D_MODEL], vecs_ref[l, 3:4, 0:D_MODEL])

        # ---- position-wise FFN + residual + post-LN ----
        ff = jnp.dot(h.astype(bf16), w_in_ref[l, :, W1_OFF:W1_OFF + D_INNER],
                     preferred_element_type=jnp.float32) + vecs_ref[l, 4:5, 0:D_INNER]
        # TODO(synk): HF XLNet ff_activation='gelu' is erf-based; tanh approx kept
        #             for robust Mosaic lowering.
        ff = jax.nn.gelu(ff, approximate=True)
        ff = jnp.dot(ff.astype(bf16), w_out_ref[l, HD:HD + D_INNER, :],
                     preferred_element_type=jnp.float32) + vecs_ref[l, 5:6, 0:D_MODEL]
        h = _layernorm(ff + h,
                       vecs_ref[l, 6:7, 0:D_MODEL], vecs_ref[l, 7:8, 0:D_MODEL])

    # ---- mean-pool over sequence (single pooling matmul, matches torch.mean(.,1)),
    #      classifier, softmax over labels (labels=None path) ----
    pooled = jnp.dot(pool, h, preferred_element_type=jnp.float32)           # (B, D)
    logits = jnp.dot(pooled, clf_ref[0:D_MODEL, :],
                     preferred_element_type=jnp.float32) + clf_ref[D_MODEL:D_MODEL + 1, :]
    logits = logits - jnp.max(logits, axis=-1, keepdims=True)
    e = jnp.exp(logits)
    o_ref[...] = e / jnp.sum(e, axis=-1, keepdims=True)                     # exact norm


# ----------------------------------- wrapper ------------------------------------

def sinusoid_pos_emb(dists, d_model):
    inv_freq = 1.0 / (10000.0 ** (jnp.arange(0, d_model, 2, dtype=jnp.float32) / d_model))
    s = dists[:, None] * inv_freq[None, :]
    return jnp.concatenate([jnp.sin(s), jnp.cos(s)], axis=-1)


def _pad_lanes(a, width):
    return jnp.pad(a, ((0, 0), (0, width - a.shape[-1])))


def xlnet_multilabel_forward(params, input_ids, attention_mask=None):
    """Equivalent of XLNetForMultiLabelSequenceClassification.forward (labels=None)."""
    B, S = input_ids.shape
    BS = B * S
    assert 2 * S <= KR_ROWS and BS <= D_MODEL, "toy-config bounds"
    if attention_mask is None:
        attention_mask = jnp.ones((B, S), jnp.float32)

    # Embedding lookup stays outside the kernel (data-dependent gather is glue).
    h0 = jnp.take(params["word_emb"], input_ids, axis=0).reshape(BS, D_MODEL)

    # Additive attention mask: block-diagonal over batch + key-padding, built once.
    r = jnp.arange(BS)
    same_batch = (r[:, None] // S) == (r[None, :] // S)
    key_ok = attention_mask.reshape(BS).astype(jnp.float32) > 0.5
    add_mask = jnp.where(same_batch & key_ok[None, :], 0.0, -1e9).astype(jnp.float32)

    # Per-batch mean-pool matrix (B, BS) with 1/S on own-batch columns.
    pool = jnp.where((r[None, :] // S) == jnp.arange(B)[:, None], 1.0 / S, 0.0
                     ).astype(jnp.float32)

    # Slab 1: activations + constants  ->  one DMA.
    x0 = jnp.concatenate([h0, _pad_lanes(add_mask, D_MODEL), _pad_lanes(pool, D_MODEL)],
                         axis=0)                                            # (2BS+B, D)

    # Relative positional table (distances S .. -(S-1)) projected by W_r per layer.
    # Input-independent -> precomputed here; zero-padded to KR_ROWS rows so the
    # in-kernel rel-shift roll runs on a full 128-lane tile.
    dists = jnp.arange(S, -S, -1, dtype=jnp.float32)
    pe = sinusoid_pos_emb(dists, D_MODEL)                                   # (2S, D)
    kr = jnp.einsum("pd,ldh->lph", pe, params["Wr"])                        # (L, 2S, HD)
    kr_pad = jnp.pad(kr, ((0, 0), (0, KR_ROWS - 2 * S), (0, 0)))            # (L, 128, HD)

    bf = lambda a: a.astype(jnp.bfloat16)
    # Slab 2: all (D, .) input-side weights + positional keys: [Wq|Wk|Wv|W1|KR].
    w_in = bf(jnp.concatenate([params["Wq"], params["Wk"], params["Wv"],
                               params["W1"], kr_pad], axis=-1))             # (L, 128, 768)
    # Slab 3: output-side weights stacked along rows: [Wo ; W2].
    w_out = bf(jnp.concatenate([params["Wo"], params["W2"]], axis=1))       # (L, 384, 128)

    # Slab 4: all per-layer small vectors (biases / LN params / attn biases).
    def vec_layer(l):
        rows = [params["r_w_bias"][l].reshape(1, -1), params["r_r_bias"][l].reshape(1, -1),
                params["ln1_g"][l].reshape(1, -1), params["ln1_b"][l].reshape(1, -1),
                params["b1"][l].reshape(1, -1), params["b2"][l].reshape(1, -1),
                params["ln2_g"][l].reshape(1, -1), params["ln2_b"][l].reshape(1, -1)]
        return jnp.concatenate([_pad_lanes(x, D_INNER) for x in rows], axis=0)
    vecs = jnp.stack([vec_layer(l) for l in range(N_LAYER)], axis=0)        # (L, 8, 256)

    # Slab 5: classifier weight (rows 0..D-1) + bias (row D).
    clf = jnp.concatenate([params["clf_w"], params["clf_b"]], axis=0)       # (D+1, NL)

    return pl.pallas_call(
        functools.partial(_xlnet_fused_kernel, B, S),
        out_shape=jax.ShapeDtypeStruct((B, NUM_LABELS), jnp.float32),
        compiler_params=pltpu.CompilerParams(vmem_limit_bytes=32 * 1024 * 1024),
    )(x0, w_in, w_out, vecs, clf)


# ------------------------------------ params ------------------------------------

def init_params(key):
    keys = iter(jax.random.split(key, 20))

    def nrm(shape, std=0.02):
        return std * jax.random.normal(next(keys), shape, jnp.float32)

    L, D, DI = N_LAYER, D_MODEL, D_INNER
    return {
        "word_emb": nrm((VOCAB, D)),
        # per-layer weights stacked along a leading layer axis (VMEM-resident)
        "Wq": nrm((L, D, HD)), "Wk": nrm((L, D, HD)), "Wv": nrm((L, D, HD)),
        "Wr": nrm((L, D, HD)), "Wo": nrm((L, HD, D)),
        "r_w_bias": nrm((L, N_HEAD, D_HEAD)),
        "r_r_bias": nrm((L, N_HEAD, D_HEAD)),
        "ln1_g": jnp.ones((L, D), jnp.float32), "ln1_b": jnp.zeros((L, D), jnp.float32),
        "W1": nrm((L, D, DI)), "b1": jnp.zeros((L, DI), jnp.float32),
        "W2": nrm((L, DI, D)), "b2": jnp.zeros((L, D), jnp.float32),
        "ln2_g": jnp.ones((L, D), jnp.float32), "ln2_b": jnp.zeros((L, D), jnp.float32),
        # classifier: xavier_normal_-style init, zero bias (as in the PyTorch module)
        "clf_w": math.sqrt(2.0 / (D + NUM_LABELS))
                 * jax.random.normal(next(keys), (D, NUM_LABELS), jnp.float32),
        "clf_b": jnp.zeros((1, NUM_LABELS), jnp.float32),
    }


# ------------------------------------- main --------------------------------------

if __name__ == "__main__":
    key = jax.random.PRNGKey(0)
    pkey, ikey = jax.random.split(key)

    params = init_params(pkey)

    B, S = 2, 8
    input_ids = jax.random.randint(ikey, (B, S), 0, VOCAB)
    attention_mask = jnp.ones((B, S), jnp.float32).at[1, -2:].set(0.0)  # pad last 2 of ex 1

    fwd = jax.jit(xlnet_multilabel_forward)
    probs = fwd(params, input_ids, attention_mask)
    probs = jax.block_until_ready(probs)

    assert probs.shape == (B, NUM_LABELS)
    assert bool(jnp.all(jnp.isfinite(probs)))
    row_sums = jnp.sum(probs, axis=1)
    assert bool(jnp.all(jnp.abs(row_sums - 1.0) < 1e-4))
    print("KERNEL_OK")
</pallas_src>

<mosaic_0001>
module attributes {stable_mosaic.version = 11 : i64} {
  func.func @_xlnet_fused_kernel(%arg0: memref<34x128xf32, #tpu.memory_space<vmem>>, %arg1: memref<2x128x768xbf16, #tpu.memory_space<vmem>>, %arg2: memref<2x384x128xbf16, #tpu.memory_space<vmem>>, %arg3: memref<2x8x256xf32, #tpu.memory_space<vmem>>, %arg4: memref<129x4xf32, #tpu.memory_space<vmem>>, %arg5: memref<2x4xf32, #tpu.memory_space<vmem>>) attributes {dimension_semantics = [], scalar_prefetch = 0 : i64, scratch_operands = 0 : i64, tpu.core_type = #tpu.core_type<tc>} {
    %c0 = arith.constant 0 : index
    %c0_0 = arith.constant 0 : index
    %0 = vector.load %arg0[%c0, %c0_0] : memref<34x128xf32, #tpu.memory_space<vmem>>, vector<16x128xf32>
    %c16 = arith.constant 16 : index
    %c0_1 = arith.constant 0 : index
    %1 = vector.load %arg0[%c16, %c0_1] : memref<34x128xf32, #tpu.memory_space<vmem>>, vector<16x16xf32>
    %c32 = arith.constant 32 : index
    %c0_2 = arith.constant 0 : index
    %2 = vector.load %arg0[%c32, %c0_2] : memref<34x128xf32, #tpu.memory_space<vmem>>, vector<2x16xf32>
    %3 = arith.truncf %0 : vector<16x128xf32> to vector<16x128xbf16>
    %c0_3 = arith.constant 0 : index
    %c0_4 = arith.constant 0 : index
    %c0_5 = arith.constant 0 : index
    %4 = vector.load %arg1[%c0_3, %c0_4, %c0_5] : memref<2x128x768xbf16, #tpu.memory_space<vmem>>, vector<1x128x384xbf16>
    %5 = vector.shape_cast %4 : vector<1x128x384xbf16> to vector<128x384xbf16>
    %cst = arith.constant dense<0.000000e+00> : vector<16x384xf32>
    %6 = tpu.matmul %3, %5, %cst {dimension_numbers = #tpu.dot_dimension_numbers<[1], [0], [0], [1], [0, 0, 1, 1], [], []>} : vector<16x128xbf16>, vector<128x384xbf16>, vector<16x384xf32> -> vector<16x384xf32>
    %7 = vector.extract_strided_slice %6 {offsets = [0, 0], sizes = [16, 64], strides = [1, 1]} : vector<16x384xf32> to vector<16x64xf32>
    %8 = vector.extract_strided_slice %6 {offsets = [0, 128], sizes = [16, 64], strides = [1, 1]} : vector<16x384xf32> to vector<16x64xf32>
    %9 = vector.extract_strided_slice %6 {offsets = [0, 256], sizes = [16, 64], strides = [1, 1]} : vector<16x384xf32> to vector<16x64xf32>
    %c0_6 = arith.constant 0 : index
    %c0_7 = arith.constant 0 : index
    %c0_8 = arith.constant 0 : index
    %10 = vector.load %arg3[%c0_6, %c0_7, %c0_8] : memref<2x8x256xf32, #tpu.memory_space<vmem>>, vector<1x1x64xf32>
    %11 = vector.shape_cast %10 : vector<1x1x64xf32> to vector<1x64xf32>
    %c0_9 = arith.constant 0 : index
    %c1 = arith.constant 1 : index
    %c0_10 = arith.constant 0 : index
    %12 = vector.load %arg3[%c0_9, %c1, %c0_10] : memref<2x8x256xf32, #tpu.memory_space<vmem>>, vector<1x1x64xf32>
    %13 = vector.shape_cast %12 : vector<1x1x64xf32> to vector<1x64xf32>
    %14 = vector.broadcast %11 : vector<1x64xf32> to vector<16x64xf32>
    %15 = arith.addf %7, %14 : vector<16x64xf32>
    %16 = arith.truncf %15 : vector<16x64xf32> to vector<16x64xbf16>
    %17 = arith.truncf %8 : vector<16x64xf32> to vector<16x64xbf16>
    %cst_11 = arith.constant dense<0.000000e+00> : vector<16x16xf32>
    %18 = tpu.matmul %16, %17, %cst_11 {dimension_numbers = #tpu.dot_dimension_numbers<[1], [1], [0], [0], [0, 0, 1, 0], [], []>} : vector<16x64xbf16>, vector<16x64xbf16>, vector<16x16xf32> -> vector<16x16xf32>
    %19 = vector.broadcast %13 : vector<1x64xf32> to vector<16x64xf32>
    %20 = arith.addf %7, %19 : vector<16x64xf32>
    %21 = arith.truncf %20 : vector<16x64xf32> to vector<16x64xbf16>
    %c0_12 = arith.constant 0 : index
    %c0_13 = arith.constant 0 : index
    %c640 = arith.constant 640 : index
    %22 = vector.load %arg1[%c0_12, %c0_13, %c640] : memref<2x128x768xbf16, #tpu.memory_space<vmem>>, vector<1x128x64xbf16>
    %23 = vector.shape_cast %22 : vector<1x128x64xbf16> to vector<128x64xbf16>
    %cst_14 = arith.constant dense<0.000000e+00> : vector<16x128xf32>
    %24 = tpu.matmul %21, %23, %cst_14 {dimension_numbers = #tpu.dot_dimension_numbers<[1], [1], [0], [0], [0, 0, 1, 0], [], []>} : vector<16x64xbf16>, vector<128x64xbf16>, vector<16x128xf32> -> vector<16x128xf32>
    %c120_i32 = arith.constant 120 : i32
    %25 = tpu.dynamic_rotate %24 by %c120_i32 dim 1 {stride = 1 : si32, stride_dimension = 0 : si32} : vector<16x128xf32>, i32 -> vector<16x128xf32>
    %26 = vector.extract_strided_slice %25 {offsets = [0, 0], sizes = [16, 16], strides = [1, 1]} : vector<16x128xf32> to vector<16x16xf32>
    %27 = arith.addf %18, %26 : vector<16x16xf32>
    %cst_15 = arith.constant 1.250000e-01 : f32
    %28 = vector.broadcast %cst_15 : f32 to vector<16x16xf32>
    %29 = arith.mulf %27, %28 : vector<16x16xf32>
    %30 = arith.addf %29, %1 : vector<16x16xf32>
    %cst_16 = arith.constant dense<0xFF800000> : vector<16xf32>
    %31 = vector.multi_reduction <maximumf>, %30, %cst_16 [1] : vector<16x16xf32> to vector<16xf32>
    %32 = vector.shape_cast %31 : vector<16xf32> to vector<16x1xf32>
    %33 = vector.broadcast %32 : vector<16x1xf32> to vector<16x16xf32>
    %34 = arith.subf %30, %33 : vector<16x16xf32>
    %35 = math.exp %34 : vector<16x16xf32>
    %cst_17 = arith.constant dense<0.000000e+00> : vector<16xf32>
    %36 = vector.multi_reduction <add>, %35, %cst_17 [1] : vector<16x16xf32> to vector<16xf32>
    %37 = vector.shape_cast %36 : vector<16xf32> to vector<16x1xf32>
    %38 = tpu.reciprocal %37 {approx = true} : vector<16x1xf32> -> vector<16x1xf32>
    %39 = vector.broadcast %38 : vector<16x1xf32> to vector<16x16xf32>
    %40 = arith.mulf %35, %39 : vector<16x16xf32>
    %41 = arith.truncf %40 : vector<16x16xf32> to vector<16x16xbf16>
    %42 = arith.truncf %9 : vector<16x64xf32> to vector<16x64xbf16>
    %cst_18 = arith.constant dense<0.000000e+00> : vector<16x64xf32>
    %43 = tpu.matmul %41, %42, %cst_18 {dimension_numbers = #tpu.dot_dimension_numbers<[1], [0], [0], [1], [0, 0, 1, 1], [], []>} : vector<16x16xbf16>, vector<16x64xbf16>, vector<16x64xf32> -> vector<16x64xf32>
    %44 = arith.truncf %43 : vector<16x64xf32> to vector<16x64xbf16>
    %c0_19 = arith.constant 0 : index
    %c0_20 = arith.constant 0 : index
    %c0_21 = arith.constant 0 : index
    %45 = vector.load %arg2[%c0_19, %c0_20, %c0_21] : memref<2x384x128xbf16, #tpu.memory_space<vmem>>, vector<1x64x128xbf16>
    %46 = vector.shape_cast %45 : vector<1x64x128xbf16> to vector<64x128xbf16>
    %cst_22 = arith.constant dense<0.000000e+00> : vector<16x128xf32>
    %47 = tpu.matmul %44, %46, %cst_22 {dimension_numbers = #tpu.dot_dimension_numbers<[1], [0], [0], [1], [0, 0, 1, 1], [], []>} : vector<16x64xbf16>, vector<64x128xbf16>, vector<16x128xf32> -> vector<16x128xf32>
    %48 = vector.extract_strided_slice %6 {offsets = [0, 64], sizes = [16, 64], strides = [1, 1]} : vector<16x384xf32> to vector<16x64xf32>
    %49 = vector.extract_strided_slice %6 {offsets = [0, 192], sizes = [16, 64], strides = [1, 1]} : vector<16x384xf32> to vector<16x64xf32>
    %50 = vector.extract_strided_slice %6 {offsets = [0, 320], sizes = [16, 64], strides = [1, 1]} : vector<16x384xf32> to vector<16x64xf32>
    %c0_23 = arith.constant 0 : index
    %c0_24 = arith.constant 0 : index
    %c64 = arith.constant 64 : index
    %51 = vector.load %arg3[%c0_23, %c0_24, %c64] : memref<2x8x256xf32, #tpu.memory_space<vmem>>, vector<1x1x64xf32>
    %52 = vector.shape_cast %51 : vector<1x1x64xf32> to vector<1x64xf32>
    %c0_25 = arith.constant 0 : index
    %c1_26 = arith.constant 1 : index
    %c64_27 = arith.constant 64 : index
    %53 = vector.load %arg3[%c0_25, %c1_26, %c64_27] : memref<2x8x256xf32, #tpu.memory_space<vmem>>, vector<1x1x64xf32>
    %54 = vector.shape_cast %53 : vector<1x1x64xf32> to vector<1x64xf32>
    %55 = vector.broadcast %52 : vector<1x64xf32> to vector<16x64xf32>
    %56 = arith.addf %48, %55 : vector<16x64xf32>
    %57 = arith.truncf %56 : vector<16x64xf32> to vector<16x64xbf16>
    %58 = arith.truncf %49 : vector<16x64xf32> to vector<16x64xbf16>
    %cst_28 = arith.constant dense<0.000000e+00> : vector<16x16xf32>
    %59 = tpu.matmul %57, %58, %cst_28 {dimension_numbers = #tpu.dot_dimension_numbers<[1], [1], [0], [0], [0, 0, 1, 0], [], []>} : vector<16x64xbf16>, vector<16x64xbf16>, vector<16x16xf32> -> vector<16x16xf32>
    %60 = vector.broadcast %54 : vector<1x64xf32> to vector<16x64xf32>
    %61 = arith.addf %48, %60 : vector<16x64xf32>
    %62 = arith.truncf %61 : vector<16x64xf32> to vector<16x64xbf16>
    %c0_29 = arith.constant 0 : index
    %c0_30 = arith.constant 0 : index
    %c704 = arith.constant 704 : index
    %63 = vector.load %arg1[%c0_29, %c0_30, %c704] : memref<2x128x768xbf16, #tpu.memory_space<vmem>>, vector<1x128x64xbf16>
    %64 = vector.shape_cast %63 : vector<1x128x64xbf16> to vector<128x64xbf16>
    %cst_31 = arith.constant dense<0.000000e+00> : vector<16x128xf32>
    %65 = tpu.matmul %62, %64, %cst_31 {dimension_numbers = #tpu.dot_dimension_numbers<[1], [1], [0], [0], [0, 0, 1, 0], [], []>} : vector<16x64xbf16>, vector<128x64xbf16>, vector<16x128xf32> -> vector<16x128xf32>
    %c120_i32_32 = arith.constant 120 : i32
    %66 = tpu.dynamic_rotate %65 by %c120_i32_32 dim 1 {stride = 1 : si32, stride_dimension = 0 : si32} : vector<16x128xf32>, i32 -> vector<16x128xf32>
    %67 = vector.extract_strided_slice %66 {offsets = [0, 0], sizes = [16, 16], strides = [1, 1]} : vector<16x128xf32> to vector<16x16xf32>
    %68 = arith.addf %59, %67 : vector<16x16xf32>
    %cst_33 = arith.constant 1.250000e-01 : f32
    %69 = vector.broadcast %cst_33 : f32 to vector<16x16xf32>
    %70 = arith.mulf %68, %69 : vector<16x16xf32>
    %71 = arith.addf %70, %1 : vector<16x16xf32>
    %cst_34 = arith.constant dense<0xFF800000> : vector<16xf32>
    %72 = vector.multi_reduction <maximumf>, %71, %cst_34 [1] : vector<16x16xf32> to vector<16xf32>
    %73 = vector.shape_cast %72 : vector<16xf32> to vector<16x1xf32>
    %74 = vector.broadcast %73 : vector<16x1xf32> to vector<16x16xf32>
    %75 = arith.subf %71, %74 : vector<16x16xf32>
    %76 = math.exp %75 : vector<16x16xf32>
    %cst_35 = arith.constant dense<0.000000e+00> : vector<16xf32>
    %77 = vector.multi_reduction <add>, %76, %cst_35 [1] : vector<16x16xf32> to vector<16xf32>
    %78 = vector.shape_cast %77 : vector<16xf32> to vector<16x1xf32>
    %79 = tpu.reciprocal %78 {approx = true} : vector<16x1xf32> -> vector<16x1xf32>
    %80 = vector.broadcast %79 : vector<16x1xf32> to vector<16x16xf32>
    %81 = arith.mulf %76, %80 : vector<16x16xf32>
    %82 = arith.truncf %81 : vector<16x16xf32> to vector<16x16xbf16>
    %83 = arith.truncf %50 : vector<16x64xf32> to vector<16x64xbf16>
    %cst_36 = arith.constant dense<0.000000e+00> : vector<16x64xf32>
    %84 = tpu.matmul %82, %83, %cst_36 {dimension_numbers = #tpu.dot_dimension_numbers<[1], [0], [0], [1], [0, 0, 1, 1], [], []>} : vector<16x16xbf16>, vector<16x64xbf16>, vector<16x64xf32> -> vector<16x64xf32>
    %85 = arith.truncf %84 : vector<16x64xf32> to vector<16x64xbf16>
    %c0_37 = arith.constant 0 : index
    %c64_38 = arith.constant 64 : index
    %c0_39 = arith.constant 0 : index
    %86 = vector.load %arg2[%c0_37, %c64_38, %c0_39] : memref<2x384x128xbf16, #tpu.memory_space<vmem>>, vector<1x64x128xbf16>
    %87 = vector.shape_cast %86 : vector<1x64x128xbf16> to vector<64x128xbf16>
    %cst_40 = arith.constant dense<0.000000e+00> : vector<16x128xf32>
    %88 = tpu.matmul %85, %87, %cst_40 {dimension_numbers = #tpu.dot_dimension_numbers<[1], [0], [0], [1], [0, 0, 1, 1], [], []>} : vector<16x64xbf16>, vector<64x128xbf16>, vector<16x128xf32> -> vector<16x128xf32>
    %89 = arith.addf %47, %88 : vector<16x128xf32>
    %90 = arith.addf %89, %0 : vector<16x128xf32>
    %c0_41 = arith.constant 0 : index
    %c2 = arith.constant 2 : index
    %c0_42 = arith.constant 0 : index
    %91 = vector.load %arg3[%c0_41, %c2, %c0_42] : memref<2x8x256xf32, #tpu.memory_space<vmem>>, vector<1x1x128xf32>
    %92 = vector.shape_cast %91 : vector<1x1x128xf32> to vector<1x128xf32>
    %c0_43 = arith.constant 0 : index
    %c3 = arith.constant 3 : index
    %c0_44 = arith.constant 0 : index
    %93 = vector.load %arg3[%c0_43, %c3, %c0_44] : memref<2x8x256xf32, #tpu.memory_space<vmem>>, vector<1x1x128xf32>
    %94 = vector.shape_cast %93 : vector<1x1x128xf32> to vector<1x128xf32>
    %cst_45 = arith.constant dense<0.000000e+00> : vector<16xf32>
    %95 = vector.multi_reduction <add>, %90, %cst_45 [1] : vector<16x128xf32> to vector<16xf32>
    %96 = vector.shape_cast %95 : vector<16xf32> to vector<16x1xf32>
    %cst_46 = arith.constant 1.280000e+02 : f32
    %97 = vector.broadcast %cst_46 : f32 to vector<16x1xf32>
    %98 = arith.divf %96, %97 : vector<16x1xf32>
    %99 = vector.broadcast %98 : vector<16x1xf32> to vector<16x128xf32>
    %100 = arith.subf %90, %99 : vector<16x128xf32>
    %101 = vector.broadcast %98 : vector<16x1xf32> to vector<16x128xf32>
    %102 = arith.subf %90, %101 : vector<16x128xf32>
    %103 = arith.mulf %100, %102 : vector<16x128xf32>
    %cst_47 = arith.constant dense<0.000000e+00> : vector<16xf32>
    %104 = vector.multi_reduction <add>, %103, %cst_47 [1] : vector<16x128xf32> to vector<16xf32>
    %105 = vector.shape_cast %104 : vector<16xf32> to vector<16x1xf32>
    %cst_48 = arith.constant 1.280000e+02 : f32
    %106 = vector.broadcast %cst_48 : f32 to vector<16x1xf32>
    %107 = arith.divf %105, %106 : vector<16x1xf32>
    %108 = vector.broadcast %98 : vector<16x1xf32> to vector<16x128xf32>
    %109 = arith.subf %90, %108 : vector<16x128xf32>
    %cst_49 = arith.constant 9.99999996E-13 : f32
    %110 = vector.broadcast %cst_49 : f32 to vector<16x1xf32>
    %111 = arith.addf %107, %110 : vector<16x1xf32>
    %112 = math.rsqrt %111 : vector<16x1xf32>
    %113 = vector.broadcast %112 : vector<16x1xf32> to vector<16x128xf32>
    %114 = arith.mulf %109, %113 : vector<16x128xf32>
    %115 = vector.broadcast %92 : vector<1x128xf32> to vector<16x128xf32>
    %116 = arith.mulf %114, %115 : vector<16x128xf32>
    %117 = vector.broadcast %94 : vector<1x128xf32> to vector<16x128xf32>
    %118 = arith.addf %116, %117 : vector<16x128xf32>
    %119 = arith.truncf %118 : vector<16x128xf32> to vector<16x128xbf16>
    %c0_50 = arith.constant 0 : index
    %c0_51 = arith.constant 0 : index
    %c384 = arith.constant 384 : index
    %120 = vector.load %arg1[%c0_50, %c0_51, %c384] : memref<2x128x768xbf16, #tpu.memory_space<vmem>>, vector<1x128x256xbf16>
    %121 = vector.shape_cast %120 : vector<1x128x256xbf16> to vector<128x256xbf16>
    %cst_52 = arith.constant dense<0.000000e+00> : vector<16x256xf32>
    %122 = tpu.matmul %119, %121, %cst_52 {dimension_numbers = #tpu.dot_dimension_numbers<[1], [0], [0], [1], [0, 0, 1, 1], [], []>} : vector<16x128xbf16>, vector<128x256xbf16>, vector<16x256xf32> -> vector<16x256xf32>
    %c0_53 = arith.constant 0 : index
    %c4 = arith.constant 4 : index
    %c0_54 = arith.constant 0 : index
    %123 = vector.load %arg3[%c0_53, %c4, %c0_54] : memref<2x8x256xf32, #tpu.memory_space<vmem>>, vector<1x1x256xf32>
    %124 = vector.shape_cast %123 : vector<1x1x256xf32> to vector<1x256xf32>
    %125 = vector.broadcast %124 : vector<1x256xf32> to vector<16x256xf32>
    %126 = arith.addf %122, %125 : vector<16x256xf32>
    %127 = arith.mulf %126, %126 : vector<16x256xf32>
    %128 = arith.mulf %126, %127 : vector<16x256xf32>
    %cst_55 = arith.constant 4.471500e-02 : f32
    %129 = vector.broadcast %cst_55 : f32 to vector<16x256xf32>
    %130 = arith.mulf %129, %128 : vector<16x256xf32>
    %131 = arith.addf %126, %130 : vector<16x256xf32>
    %cst_56 = arith.constant 0.797884583 : f32
    %132 = vector.broadcast %cst_56 : f32 to vector<16x256xf32>
    %133 = arith.mulf %132, %131 : vector<16x256xf32>
    %134 = math.tanh %133 : vector<16x256xf32>
    %cst_57 = arith.constant 1.000000e+00 : f32
    %135 = vector.broadcast %cst_57 : f32 to vector<16x256xf32>
    %136 = arith.addf %135, %134 : vector<16x256xf32>
    %cst_58 = arith.constant 5.000000e-01 : f32
    %137 = vector.broadcast %cst_58 : f32 to vector<16x256xf32>
    %138 = arith.mulf %137, %136 : vector<16x256xf32>
    %139 = arith.mulf %126, %138 : vector<16x256xf32>
    %140 = arith.truncf %139 : vector<16x256xf32> to vector<16x256xbf16>
    %c0_59 = arith.constant 0 : index
    %c128 = arith.constant 128 : index
    %c0_60 = arith.constant 0 : index
    %141 = vector.load %arg2[%c0_59, %c128, %c0_60] : memref<2x384x128xbf16, #tpu.memory_space<vmem>>, vector<1x256x128xbf16>
    %142 = vector.shape_cast %141 : vector<1x256x128xbf16> to vector<256x128xbf16>
    %cst_61 = arith.constant dense<0.000000e+00> : vector<16x128xf32>
    %143 = tpu.matmul %140, %142, %cst_61 {dimension_numbers = #tpu.dot_dimension_numbers<[1], [0], [0], [1], [0, 0, 1, 1], [], []>} : vector<16x256xbf16>, vector<256x128xbf16>, vector<16x128xf32> -> vector<16x128xf32>
    %c0_62 = arith.constant 0 : index
    %c5 = arith.constant 5 : index
    %c0_63 = arith.constant 0 : index
    %144 = vector.load %arg3[%c0_62, %c5, %c0_63] : memref<2x8x256xf32, #tpu.memory_space<vmem>>, vector<1x1x128xf32>
    %145 = vector.shape_cast %144 : vector<1x1x128xf32> to vector<1x128xf32>
    %146 = vector.broadcast %145 : vector<1x128xf32> to vector<16x128xf32>
    %147 = arith.addf %143, %146 : vector<16x128xf32>
    %148 = arith.addf %147, %118 : vector<16x128xf32>
    %c0_64 = arith.constant 0 : index
    %c6 = arith.constant 6 : index
    %c0_65 = arith.constant 0 : index
    %149 = vector.load %arg3[%c0_64, %c6, %c0_65] : memref<2x8x256xf32, #tpu.memory_space<vmem>>, vector<1x1x128xf32>
    %150 = vector.shape_cast %149 : vector<1x1x128xf32> to vector<1x128xf32>
    %c0_66 = arith.constant 0 : index
    %c7 = arith.constant 7 : index
    %c0_67 = arith.constant 0 : index
    %151 = vector.load %arg3[%c0_66, %c7, %c0_67] : memref<2x8x256xf32, #tpu.memory_space<vmem>>, vector<1x1x128xf32>
    %152 = vector.shape_cast %151 : vector<1x1x128xf32> to vector<1x128xf32>
    %cst_68 = arith.constant dense<0.000000e+00> : vector<16xf32>
    %153 = vector.multi_reduction <add>, %148, %cst_68 [1] : vector<16x128xf32> to vector<16xf32>
    %154 = vector.shape_cast %153 : vector<16xf32> to vector<16x1xf32>
    %cst_69 = arith.constant 1.280000e+02 : f32
    %155 = vector.broadcast %cst_69 : f32 to vector<16x1xf32>
    %156 = arith.divf %154, %155 : vector<16x1xf32>
    %157 = vector.broadcast %156 : vector<16x1xf32> to vector<16x128xf32>
    %158 = arith.subf %148, %157 : vector<16x128xf32>
    %159 = vector.broadcast %156 : vector<16x1xf32> to vector<16x128xf32>
    %160 = arith.subf %148, %159 : vector<16x128xf32>
    %161 = arith.mulf %158, %160 : vector<16x128xf32>
    %cst_70 = arith.constant dense<0.000000e+00> : vector<16xf32>
    %162 = vector.multi_reduction <add>, %161, %cst_70 [1] : vector<16x128xf32> to vector<16xf32>
    %163 = vector.shape_cast %162 : vector<16xf32> to vector<16x1xf32>
    %cst_71 = arith.constant 1.280000e+02 : f32
    %164 = vector.broadcast %cst_71 : f32 to vector<16x1xf32>
    %165 = arith.divf %163, %164 : vector<16x1xf32>
    %166 = vector.broadcast %156 : vector<16x1xf32> to vector<16x128xf32>
    %167 = arith.subf %148, %166 : vector<16x128xf32>
    %cst_72 = arith.constant 9.99999996E-13 : f32
    %168 = vector.broadcast %cst_72 : f32 to vector<16x1xf32>
    %169 = arith.addf %165, %168 : vector<16x1xf32>
    %170 = math.rsqrt %169 : vector<16x1xf32>
    %171 = vector.broadcast %170 : vector<16x1xf32> to vector<16x128xf32>
    %172 = arith.mulf %167, %171 : vector<16x128xf32>
    %173 = vector.broadcast %150 : vector<1x128xf32> to vector<16x128xf32>
    %174 = arith.mulf %172, %173 : vector<16x128xf32>
    %175 = vector.broadcast %152 : vector<1x128xf32> to vector<16x128xf32>
    %176 = arith.addf %174, %175 : vector<16x128xf32>
    %177 = arith.truncf %176 : vector<16x128xf32> to vector<16x128xbf16>
    %c1_73 = arith.constant 1 : index
    %c0_74 = arith.constant 0 : index
    %c0_75 = arith.constant 0 : index
    %178 = vector.load %arg1[%c1_73, %c0_74, %c0_75] : memref<2x128x768xbf16, #tpu.memory_space<vmem>>, vector<1x128x384xbf16>
    %179 = vector.shape_cast %178 : vector<1x128x384xbf16> to vector<128x384xbf16>
    %cst_76 = arith.constant dense<0.000000e+00> : vector<16x384xf32>
    %180 = tpu.matmul %177, %179, %cst_76 {dimension_numbers = #tpu.dot_dimension_numbers<[1], [0], [0], [1], [0, 0, 1, 1], [], []>} : vector<16x128xbf16>, vector<128x384xbf16>, vector<16x384xf32> -> vector<16x384xf32>
    %181 = vector.extract_strided_slice %180 {offsets = [0, 0], sizes = [16, 64], strides = [1, 1]} : vector<16x384xf32> to vector<16x64xf32>
    %182 = vector.extract_strided_slice %180 {offsets = [0, 128], sizes = [16, 64], strides = [1, 1]} : vector<16x384xf32> to vector<16x64xf32>
    %183 = vector.extract_strided_slice %180 {offsets = [0, 256], sizes = [16, 64], strides = [1, 1]} : vector<16x384xf32> to vector<16x64xf32>
    %c1_77 = arith.constant 1 : index
    %c0_78 = arith.constant 0 : index
    %c0_79 = arith.constant 0 : index
    %184 = vector.load %arg3[%c1_77, %c0_78, %c0_79] : memref<2x8x256xf32, #tpu.memory_space<vmem>>, vector<1x1x64xf32>
    %185 = vector.shape_cast %184 : vector<1x1x64xf32> to vector<1x64xf32>
    %c1_80 = arith.constant 1 : index
    %c1_81 = arith.constant 1 : index
    %c0_82 = arith.constant 0 : index
    %186 = vector.load %arg3[%c1_80, %c1_81, %c0_82] : memref<2x8x256xf32, #tpu.memory_space<vmem>>, vector<1x1x64xf32>
    %187 = vector.shape_cast %186 : vector<1x1x64xf32> to vector<1x64xf32>
    %188 = vector.broadcast %185 : vector<1x64xf32> to vector<16x64xf32>
    %189 = arith.addf %181, %188 : vector<16x64xf32>
    %190 = arith.truncf %189 : vector<16x64xf32> to vector<16x64xbf16>
    %191 = arith.truncf %182 : vector<16x64xf32> to vector<16x64xbf16>
    %cst_83 = arith.constant dense<0.000000e+00> : vector<16x16xf32>
    %192 = tpu.matmul %190, %191, %cst_83 {dimension_numbers = #tpu.dot_dimension_numbers<[1], [1], [0], [0], [0, 0, 1, 0], [], []>} : vector<16x64xbf16>, vector<16x64xbf16>, vector<16x16xf32> -> vector<16x16xf32>
    %193 = vector.broadcast %187 : vector<1x64xf32> to vector<16x64xf32>
    %194 = arith.addf %181, %193 : vector<16x64xf32>
    %195 = arith.truncf %194 : vector<16x64xf32> to vector<16x64xbf16>
    %c1_84 = arith.constant 1 : index
    %c0_85 = arith.constant 0 : index
    %c640_86 = arith.constant 640 : index
    %196 = vector.load %arg1[%c1_84, %c0_85, %c640_86] : memref<2x128x768xbf16, #tpu.memory_space<vmem>>, vector<1x128x64xbf16>
    %197 = vector.shape_cast %196 : vector<1x128x64xbf16> to vector<128x64xbf16>
    %cst_87 = arith.constant dense<0.000000e+00> : vector<16x128xf32>
    %198 = tpu.matmul %195, %197, %cst_87 {dimension_numbers = #tpu.dot_dimension_numbers<[1], [1], [0], [0], [0, 0, 1, 0], [], []>} : vector<16x64xbf16>, vector<128x64xbf16>, vector<16x128xf32> -> vector<16x128xf32>
    %c120_i32_88 = arith.constant 120 : i32
    %199 = tpu.dynamic_rotate %198 by %c120_i32_88 dim 1 {stride = 1 : si32, stride_dimension = 0 : si32} : vector<16x128xf32>, i32 -> vector<16x128xf32>
    %200 = vector.extract_strided_slice %199 {offsets = [0, 0], sizes = [16, 16], strides = [1, 1]} : vector<16x128xf32> to vector<16x16xf32>
    %201 = arith.addf %192, %200 : vector<16x16xf32>
    %cst_89 = arith.constant 1.250000e-01 : f32
    %202 = vector.broadcast %cst_89 : f32 to vector<16x16xf32>
    %203 = arith.mulf %201, %202 : vector<16x16xf32>
    %204 = arith.addf %203, %1 : vector<16x16xf32>
    %cst_90 = arith.constant dense<0xFF800000> : vector<16xf32>
    %205 = vector.multi_reduction <maximumf>, %204, %cst_90 [1] : vector<16x16xf32> to vector<16xf32>
    %206 = vector.shape_cast %205 : vector<16xf32> to vector<16x1xf32>
    %207 = vector.broadcast %206 : vector<16x1xf32> to vector<16x16xf32>
    %208 = arith.subf %204, %207 : vector<16x16xf32>
    %209 = math.exp %208 : vector<16x16xf32>
    %cst_91 = arith.constant dense<0.000000e+00> : vector<16xf32>
    %210 = vector.multi_reduction <add>, %209, %cst_91 [1] : vector<16x16xf32> to vector<16xf32>
    %211 = vector.shape_cast %210 : vector<16xf32> to vector<16x1xf32>
    %212 = tpu.reciprocal %211 {approx = true} : vector<16x1xf32> -> vector<16x1xf32>
    %213 = vector.broadcast %212 : vector<16x1xf32> to vector<16x16xf32>
    %214 = arith.mulf %209, %213 : vector<16x16xf32>
    %215 = arith.truncf %214 : vector<16x16xf32> to vector<16x16xbf16>
    %216 = arith.truncf %183 : vector<16x64xf32> to vector<16x64xbf16>
    %cst_92 = arith.constant dense<0.000000e+00> : vector<16x64xf32>
    %217 = tpu.matmul %215, %216, %cst_92 {dimension_numbers = #tpu.dot_dimension_numbers<[1], [0], [0], [1], [0, 0, 1, 1], [], []>} : vector<16x16xbf16>, vector<16x64xbf16>, vector<16x64xf32> -> vector<16x64xf32>
    %218 = arith.truncf %217 : vector<16x64xf32> to vector<16x64xbf16>
    %c1_93 = arith.constant 1 : index
    %c0_94 = arith.constant 0 : index
    %c0_95 = arith.constant 0 : index
    %219 = vector.load %arg2[%c1_93, %c0_94, %c0_95] : memref<2x384x128xbf16, #tpu.memory_space<vmem>>, vector<1x64x128xbf16>
    %220 = vector.shape_cast %219 : vector<1x64x128xbf16> to vector<64x128xbf16>
    %cst_96 = arith.constant dense<0.000000e+00> : vector<16x128xf32>
    %221 = tpu.matmul %218, %220, %cst_96 {dimension_numbers = #tpu.dot_dimension_numbers<[1], [0], [0], [1], [0, 0, 1, 1], [], []>} : vector<16x64xbf16>, vector<64x128xbf16>, vector<16x128xf32> -> vector<16x128xf32>
    %222 = vector.extract_strided_slice %180 {offsets = [0, 64], sizes = [16, 64], strides = [1, 1]} : vector<16x384xf32> to vector<16x64xf32>
    %223 = vector.extract_strided_slice %180 {offsets = [0, 192], sizes = [16, 64], strides = [1, 1]} : vector<16x384xf32> to vector<16x64xf32>
    %224 = vector.extract_strided_slice %180 {offsets = [0, 320], sizes = [16, 64], strides = [1, 1]} : vector<16x384xf32> to vector<16x64xf32>
    %c1_97 = arith.constant 1 : index
    %c0_98 = arith.constant 0 : index
    %c64_99 = arith.constant 64 : index
    %225 = vector.load %arg3[%c1_97, %c0_98, %c64_99] : memref<2x8x256xf32, #tpu.memory_space<vmem>>, vector<1x1x64xf32>
    %226 = vector.shape_cast %225 : vector<1x1x64xf32> to vector<1x64xf32>
    %c1_100 = arith.constant 1 : index
    %c1_101 = arith.constant 1 : index
    %c64_102 = arith.constant 64 : index
    %227 = vector.load %arg3[%c1_100, %c1_101, %c64_102] : memref<2x8x256xf32, #tpu.memory_space<vmem>>, vector<1x1x64xf32>
    %228 = vector.shape_cast %227 : vector<1x1x64xf32> to vector<1x64xf32>
    %229 = vector.broadcast %226 : vector<1x64xf32> to vector<16x64xf32>
    %230 = arith.addf %222, %229 : vector<16x64xf32>
    %231 = arith.truncf %230 : vector<16x64xf32> to vector<16x64xbf16>
    %232 = arith.truncf %223 : vector<16x64xf32> to vector<16x64xbf16>
    %cst_103 = arith.constant dense<0.000000e+00> : vector<16x16xf32>
    %233 = tpu.matmul %231, %232, %cst_103 {dimension_numbers = #tpu.dot_dimension_numbers<[1], [1], [0], [0], [0, 0, 1, 0], [], []>} : vector<16x64xbf16>, vector<16x64xbf16>, vector<16x16xf32> -> vector<16x16xf32>
    %234 = vector.broadcast %228 : vector<1x64xf32> to vector<16x64xf32>
    %235 = arith.addf %222, %234 : vector<16x64xf32>
    %236 = arith.truncf %235 : vector<16x64xf32> to vector<16x64xbf16>
    %c1_104 = arith.constant 1 : index
    %c0_105 = arith.constant 0 : index
    %c704_106 = arith.constant 704 : index
    %237 = vector.load %arg1[%c1_104, %c0_105, %c704_106] : memref<2x128x768xbf16, #tpu.memory_space<vmem>>, vector<1x128x64xbf16>
    %238 = vector.shape_cast %237 : vector<1x128x64xbf16> to vector<128x64xbf16>
    %cst_107 = arith.constant dense<0.000000e+00> : vector<16x128xf32>
    %239 = tpu.matmul %236, %238, %cst_107 {dimension_numbers = #tpu.dot_dimension_numbers<[1], [1], [0], [0], [0, 0, 1, 0], [], []>} : vector<16x64xbf16>, vector<128x64xbf16>, vector<16x128xf32> -> vector<16x128xf32>
    %c120_i32_108 = arith.constant 120 : i32
    %240 = tpu.dynamic_rotate %239 by %c120_i32_108 dim 1 {stride = 1 : si32, stride_dimension = 0 : si32} : vector<16x128xf32>, i32 -> vector<16x128xf32>
    %241 = vector.extract_strided_slice %240 {offsets = [0, 0], sizes = [16, 16], strides = [1, 1]} : vector<16x128xf32> to vector<16x16xf32>
    %242 = arith.addf %233, %241 : vector<16x16xf32>
    %cst_109 = arith.constant 1.250000e-01 : f32
    %243 = vector.broadcast %cst_109 : f32 to vector<16x16xf32>
    %244 = arith.mulf %242, %243 : vector<16x16xf32>
    %245 = arith.addf %244, %1 : vector<16x16xf32>
    %cst_110 = arith.constant dense<0xFF800000> : vector<16xf32>
    %246 = vector.multi_reduction <maximumf>, %245, %cst_110 [1] : vector<16x16xf32> to vector<16xf32>
    %247 = vector.shape_cast %246 : vector<16xf32> to vector<16x1xf32>
    %248 = vector.broadcast %247 : vector<16x1xf32> to vector<16x16xf32>
    %249 = arith.subf %245, %248 : vector<16x16xf32>
    %250 = math.exp %249 : vector<16x16xf32>
    %cst_111 = arith.constant dense<0.000000e+00> : vector<16xf32>
    %251 = vector.multi_reduction <add>, %250, %cst_111 [1] : vector<16x16xf32> to vector<16xf32>
    %252 = vector.shape_cast %251 : vector<16xf32> to vector<16x1xf32>
    %253 = tpu.reciprocal %252 {approx = true} : vector<16x1xf32> -> vector<16x1xf32>
    %254 = vector.broadcast %253 : vector<16x1xf32> to vector<16x16xf32>
    %255 = arith.mulf %250, %254 : vector<16x16xf32>
    %256 = arith.truncf %255 : vector<16x16xf32> to vector<16x16xbf16>
    %257 = arith.truncf %224 : vector<16x64xf32> to vector<16x64xbf16>
    %cst_112 = arith.constant dense<0.000000e+00> : vector<16x64xf32>
    %258 = tpu.matmul %256, %257, %cst_112 {dimension_numbers = #tpu.dot_dimension_numbers<[1], [0], [0], [1], [0, 0, 1, 1], [], []>} : vector<16x16xbf16>, vector<16x64xbf16>, vector<16x64xf32> -> vector<16x64xf32>
    %259 = arith.truncf %258 : vector<16x64xf32> to vector<16x64xbf16>
    %c1_113 = arith.constant 1 : index
    %c64_114 = arith.constant 64 : index
    %c0_115 = arith.constant 0 : index
    %260 = vector.load %arg2[%c1_113, %c64_114, %c0_115] : memref<2x384x128xbf16, #tpu.memory_space<vmem>>, vector<1x64x128xbf16>
    %261 = vector.shape_cast %260 : vector<1x64x128xbf16> to vector<64x128xbf16>
    %cst_116 = arith.constant dense<0.000000e+00> : vector<16x128xf32>
    %262 = tpu.matmul %259, %261, %cst_116 {dimension_numbers = #tpu.dot_dimension_numbers<[1], [0], [0], [1], [0, 0, 1, 1], [], []>} : vector<16x64xbf16>, vector<64x128xbf16>, vector<16x128xf32> -> vector<16x128xf32>
    %263 = arith.addf %221, %262 : vector<16x128xf32>
    %264 = arith.addf %263, %176 : vector<16x128xf32>
    %c1_117 = arith.constant 1 : index
    %c2_118 = arith.constant 2 : index
    %c0_119 = arith.constant 0 : index
    %265 = vector.load %arg3[%c1_117, %c2_118, %c0_119] : memref<2x8x256xf32, #tpu.memory_space<vmem>>, vector<1x1x128xf32>
    %266 = vector.shape_cast %265 : vector<1x1x128xf32> to vector<1x128xf32>
    %c1_120 = arith.constant 1 : index
    %c3_121 = arith.constant 3 : index
    %c0_122 = arith.constant 0 : index
    %267 = vector.load %arg3[%c1_120, %c3_121, %c0_122] : memref<2x8x256xf32, #tpu.memory_space<vmem>>, vector<1x1x128xf32>
    %268 = vector.shape_cast %267 : vector<1x1x128xf32> to vector<1x128xf32>
    %cst_123 = arith.constant dense<0.000000e+00> : vector<16xf32>
    %269 = vector.multi_reduction <add>, %264, %cst_123 [1] : vector<16x128xf32> to vector<16xf32>
    %270 = vector.shape_cast %269 : vector<16xf32> to vector<16x1xf32>
    %cst_124 = arith.constant 1.280000e+02 : f32
    %271 = vector.broadcast %cst_124 : f32 to vector<16x1xf32>
    %272 = arith.divf %270, %271 : vector<16x1xf32>
    %273 = vector.broadcast %272 : vector<16x1xf32> to vector<16x128xf32>
    %274 = arith.subf %264, %273 : vector<16x128xf32>
    %275 = vector.broadcast %272 : vector<16x1xf32> to vector<16x128xf32>
    %276 = arith.subf %264, %275 : vector<16x128xf32>
    %277 = arith.mulf %274, %276 : vector<16x128xf32>
    %cst_125 = arith.constant dense<0.000000e+00> : vector<16xf32>
    %278 = vector.multi_reduction <add>, %277, %cst_125 [1] : vector<16x128xf32> to vector<16xf32>
    %279 = vector.shape_cast %278 : vector<16xf32> to vector<16x1xf32>
    %cst_126 = arith.constant 1.280000e+02 : f32
    %280 = vector.broadcast %cst_126 : f32 to vector<16x1xf32>
    %281 = arith.divf %279, %280 : vector<16x1xf32>
    %282 = vector.broadcast %272 : vector<16x1xf32> to vector<16x128xf32>
    %283 = arith.subf %264, %282 : vector<16x128xf32>
    %cst_127 = arith.constant 9.99999996E-13 : f32
    %284 = vector.broadcast %cst_127 : f32 to vector<16x1xf32>
    %285 = arith.addf %281, %284 : vector<16x1xf32>
    %286 = math.rsqrt %285 : vector<16x1xf32>
    %287 = vector.broadcast %286 : vector<16x1xf32> to vector<16x128xf32>
    %288 = arith.mulf %283, %287 : vector<16x128xf32>
    %289 = vector.broadcast %266 : vector<1x128xf32> to vector<16x128xf32>
    %290 = arith.mulf %288, %289 : vector<16x128xf32>
    %291 = vector.broadcast %268 : vector<1x128xf32> to vector<16x128xf32>
    %292 = arith.addf %290, %291 : vector<16x128xf32>
    %293 = arith.truncf %292 : vector<16x128xf32> to vector<16x128xbf16>
    %c1_128 = arith.constant 1 : index
    %c0_129 = arith.constant 0 : index
    %c384_130 = arith.constant 384 : index
    %294 = vector.load %arg1[%c1_128, %c0_129, %c384_130] : memref<2x128x768xbf16, #tpu.memory_space<vmem>>, vector<1x128x256xbf16>
    %295 = vector.shape_cast %294 : vector<1x128x256xbf16> to vector<128x256xbf16>
    %cst_131 = arith.constant dense<0.000000e+00> : vector<16x256xf32>
    %296 = tpu.matmul %293, %295, %cst_131 {dimension_numbers = #tpu.dot_dimension_numbers<[1], [0], [0], [1], [0, 0, 1, 1], [], []>} : vector<16x128xbf16>, vector<128x256xbf16>, vector<16x256xf32> -> vector<16x256xf32>
    %c1_132 = arith.constant 1 : index
    %c4_133 = arith.constant 4 : index
    %c0_134 = arith.constant 0 : index
    %297 = vector.load %arg3[%c1_132, %c4_133, %c0_134] : memref<2x8x256xf32, #tpu.memory_space<vmem>>, vector<1x1x256xf32>
    %298 = vector.shape_cast %297 : vector<1x1x256xf32> to vector<1x256xf32>
    %299 = vector.broadcast %298 : vector<1x256xf32> to vector<16x256xf32>
    %300 = arith.addf %296, %299 : vector<16x256xf32>
    %301 = arith.mulf %300, %300 : vector<16x256xf32>
    %302 = arith.mulf %300, %301 : vector<16x256xf32>
    %cst_135 = arith.constant 4.471500e-02 : f32
    %303 = vector.broadcast %cst_135 : f32 to vector<16x256xf32>
    %304 = arith.mulf %303, %302 : vector<16x256xf32>
    %305 = arith.addf %300, %304 : vector<16x256xf32>
    %cst_136 = arith.constant 0.797884583 : f32
    %306 = vector.broadcast %cst_136 : f32 to vector<16x256xf32>
    %307 = arith.mulf %306, %305 : vector<16x256xf32>
    %308 = math.tanh %307 : vector<16x256xf32>
    %cst_137 = arith.constant 1.000000e+00 : f32
    %309 = vector.broadcast %cst_137 : f32 to vector<16x256xf32>
    %310 = arith.addf %309, %308 : vector<16x256xf32>
    %cst_138 = arith.constant 5.000000e-01 : f32
    %311 = vector.broadcast %cst_138 : f32 to vector<16x256xf32>
    %312 = arith.mulf %311, %310 : vector<16x256xf32>
    %313 = arith.mulf %300, %312 : vector<16x256xf32>
    %314 = arith.truncf %313 : vector<16x256xf32> to vector<16x256xbf16>
    %c1_139 = arith.constant 1 : index
    %c128_140 = arith.constant 128 : index
    %c0_141 = arith.constant 0 : index
    %315 = vector.load %arg2[%c1_139, %c128_140, %c0_141] : memref<2x384x128xbf16, #tpu.memory_space<vmem>>, vector<1x256x128xbf16>
    %316 = vector.shape_cast %315 : vector<1x256x128xbf16> to vector<256x128xbf16>
    %cst_142 = arith.constant dense<0.000000e+00> : vector<16x128xf32>
    %317 = tpu.matmul %314, %316, %cst_142 {dimension_numbers = #tpu.dot_dimension_numbers<[1], [0], [0], [1], [0, 0, 1, 1], [], []>} : vector<16x256xbf16>, vector<256x128xbf16>, vector<16x128xf32> -> vector<16x128xf32>
    %c1_143 = arith.constant 1 : index
    %c5_144 = arith.constant 5 : index
    %c0_145 = arith.constant 0 : index
    %318 = vector.load %arg3[%c1_143, %c5_144, %c0_145] : memref<2x8x256xf32, #tpu.memory_space<vmem>>, vector<1x1x128xf32>
    %319 = vector.shape_cast %318 : vector<1x1x128xf32> to vector<1x128xf32>
    %320 = vector.broadcast %319 : vector<1x128xf32> to vector<16x128xf32>
    %321 = arith.addf %317, %320 : vector<16x128xf32>
    %322 = arith.addf %321, %292 : vector<16x128xf32>
    %c1_146 = arith.constant 1 : index
    %c6_147 = arith.constant 6 : index
    %c0_148 = arith.constant 0 : index
    %323 = vector.load %arg3[%c1_146, %c6_147, %c0_148] : memref<2x8x256xf32, #tpu.memory_space<vmem>>, vector<1x1x128xf32>
    %324 = vector.shape_cast %323 : vector<1x1x128xf32> to vector<1x128xf32>
    %c1_149 = arith.constant 1 : index
    %c7_150 = arith.constant 7 : index
    %c0_151 = arith.constant 0 : index
    %325 = vector.load %arg3[%c1_149, %c7_150, %c0_151] : memref<2x8x256xf32, #tpu.memory_space<vmem>>, vector<1x1x128xf32>
    %326 = vector.shape_cast %325 : vector<1x1x128xf32> to vector<1x128xf32>
    %cst_152 = arith.constant dense<0.000000e+00> : vector<16xf32>
    %327 = vector.multi_reduction <add>, %322, %cst_152 [1] : vector<16x128xf32> to vector<16xf32>
    %328 = vector.shape_cast %327 : vector<16xf32> to vector<16x1xf32>
    %cst_153 = arith.constant 1.280000e+02 : f32
    %329 = vector.broadcast %cst_153 : f32 to vector<16x1xf32>
    %330 = arith.divf %328, %329 : vector<16x1xf32>
    %331 = vector.broadcast %330 : vector<16x1xf32> to vector<16x128xf32>
    %332 = arith.subf %322, %331 : vector<16x128xf32>
    %333 = vector.broadcast %330 : vector<16x1xf32> to vector<16x128xf32>
    %334 = arith.subf %322, %333 : vector<16x128xf32>
    %335 = arith.mulf %332, %334 : vector<16x128xf32>
    %cst_154 = arith.constant dense<0.000000e+00> : vector<16xf32>
    %336 = vector.multi_reduction <add>, %335, %cst_154 [1] : vector<16x128xf32> to vector<16xf32>
    %337 = vector.shape_cast %336 : vector<16xf32> to vector<16x1xf32>
    %cst_155 = arith.constant 1.280000e+02 : f32
    %338 = vector.broadcast %cst_155 : f32 to vector<16x1xf32>
    %339 = arith.divf %337, %338 : vector<16x1xf32>
    %340 = vector.broadcast %330 : vector<16x1xf32> to vector<16x128xf32>
    %341 = arith.subf %322, %340 : vector<16x128xf32>
    %cst_156 = arith.constant 9.99999996E-13 : f32
    %342 = vector.broadcast %cst_156 : f32 to vector<16x1xf32>
    %343 = arith.addf %339, %342 : vector<16x1xf32>
    %344 = math.rsqrt %343 : vector<16x1xf32>
    %345 = vector.broadcast %344 : vector<16x1xf32> to vector<16x128xf32>
    %346 = arith.mulf %341, %345 : vector<16x128xf32>
    %347 = vector.broadcast %324 : vector<1x128xf32> to vector<16x128xf32>
    %348 = arith.mulf %346, %347 : vector<16x128xf32>
    %349 = vector.broadcast %326 : vector<1x128xf32> to vector<16x128xf32>
    %350 = arith.addf %348, %349 : vector<16x128xf32>
    %cst_157 = arith.constant dense<0.000000e+00> : vector<2x128xf32>
    %351 = tpu.matmul %2, %350, %cst_157 {dimension_numbers = #tpu.dot_dimension_numbers<[1], [0], [0], [1], [0, 0, 1, 1], [], []>} : vector<2x16xf32>, vector<16x128xf32>, vector<2x128xf32> -> vector<2x128xf32>
    %c0_158 = arith.constant 0 : index
    %c0_159 = arith.constant 0 : index
    %352 = vector.load %arg4[%c0_158, %c0_159] : memref<129x4xf32, #tpu.memory_space<vmem>>, vector<128x4xf32>
    %cst_160 = arith.constant dense<0.000000e+00> : vector<2x4xf32>
    %353 = tpu.matmul %351, %352, %cst_160 {dimension_numbers = #tpu.dot_dimension_numbers<[1], [0], [0], [1], [0, 0, 1, 1], [], []>} : vector<2x128xf32>, vector<128x4xf32>, vector<2x4xf32> -> vector<2x4xf32>
    %c128_161 = arith.constant 128 : index
    %c0_162 = arith.constant 0 : index
    %354 = vector.load %arg4[%c128_161, %c0_162] : memref<129x4xf32, #tpu.memory_space<vmem>>, vector<1x4xf32>
    %355 = vector.broadcast %354 : vector<1x4xf32> to vector<2x4xf32>
    %356 = arith.addf %353, %355 : vector<2x4xf32>
    %cst_163 = arith.constant dense<0xFF800000> : vector<2xf32>
    %357 = vector.multi_reduction <maximumf>, %356, %cst_163 [1] : vector<2x4xf32> to vector<2xf32>
    %358 = vector.shape_cast %357 : vector<2xf32> to vector<2x1xf32>
    %359 = vector.broadcast %358 : vector<2x1xf32> to vector<2x4xf32>
    %360 = arith.subf %356, %359 : vector<2x4xf32>
    %361 = math.exp %360 : vector<2x4xf32>
    %cst_164 = arith.constant dense<0.000000e+00> : vector<2xf32>
    %362 = vector.multi_reduction <add>, %361, %cst_164 [1] : vector<2x4xf32> to vector<2xf32>
    %363 = vector.shape_cast %362 : vector<2xf32> to vector<2x1xf32>
    %364 = vector.broadcast %363 : vector<2x1xf32> to vector<2x4xf32>
    %365 = arith.divf %361, %364 : vector<2x4xf32>
    %c0_165 = arith.constant 0 : index
    %c0_166 = arith.constant 0 : index
    %366 = vector.load %arg5[%c0_165, %c0_166] : memref<2x4xf32, #tpu.memory_space<vmem>>, vector<2x4xf32>
    tpu.vector_store %arg5[%c0_165, %c0_166], %365 {strides = array<i32>} : memref<2x4xf32, #tpu.memory_space<vmem>>, vector<2x4xf32>,
    return
  }
}

</mosaic_0001>

<llo_original>
// kernel: squeeze.6
$region0: #{squeeze.6}
  %s0 = inlined_call_operand.vmem [shape: f32[1,2,64], index: 0, kind: input, shape index: {}]
  %s1 = inlined_call_operand.vmem [shape: f32[1,128], index: 1, kind: output, shape index: {}]
  $region1: #{squeeze.6} parent=0
    #allocation0 [shape = 'u8[4096]{0}', space=vmem, size = 0x1000, scoped, tag = 'scoped mem for output reshape']
    #allocation1 [shape = 'u8[4096]{0}', space=vmem, size = 0x1000, scoped, tag = 'scoped mem for input reshape']
    %s3 = ssub.s32 4, 1
    %v4 = vld [vmem:[%s0] sm:%s3]
    %5 = vst [vmem:[#allocation1] sm:%s3] %v4
    %v6 = vld [vmem:[#allocation1] sm:$0x1]
    %vm7 = vcmask 523264
    %8 = vst.msk [vmem:[#allocation0] sm:$0x1] %vm7, %v6
    %s9 = scalar_lea.vmem [#allocation1], 1
    %v10 = vld [vmem:[%s9] sm:$0x1]
    %11 = vrot.lane.b32.xlu0 %v10, 64
    %v12 = vpop.permute.xlu0 %11
    %vm13 = vcmask 1048064
    %14 = vst.msk [vmem:[#allocation0] sm:$0x1] %vm13, %v12
    %s16 = ssub.s32 2, 1
    %v17 = vld [vmem:[#allocation0] sm:%s16]
    %s19 = ssub.s32 2, 1
    %20 = vst [vmem:[%s1] sm:%s19] %v17

// kernel: xlnet_multilabel_forward.1
$region0: #{xlnet_multilabel_forward.1}
  #allocation0 [shape = 'u32[]', space=smem, size = 0x4, offset = 0x4, fixed_abs, tag = 'smem constant byte address 0x4 - core index']
  #allocation1 [shape = 'u32[72,128]{1,0:T(1,128)}', space=vmem, size = 0x9000, scoped, tag = 'internal scratch']
  %s0 = inlined_call_operand.vmem [shape: f32[34,128], index: 0, kind: input, shape index: {}]
  %s1 = inlined_call_operand.vmem [shape: bf16[2,128,768], index: 1, kind: input, shape index: {}]
  %s2 = inlined_call_operand.vmem [shape: bf16[2,384,128], index: 2, kind: input, shape index: {}]
  %s3 = inlined_call_operand.vmem [shape: f32[2,8,256], index: 3, kind: input, shape index: {}]
  %s4 = inlined_call_operand.vmem [shape: f32[129,4], index: 4, kind: input, shape index: {}]
  %s5 = inlined_call_operand.hbm [shape: f32[2,4], index: 5, kind: output, shape index: {}]
  %s6 = sld [smem:[#allocation0]]
  $region30: #{xlnet_multilabel_forward.1} parent=0
    _
  %s8 = ssub.s32 1, %s6
  %s9 = scalar_select 0, %s8, %s6
  $region1: #{xlnet_multilabel_forward.1} parent=0
    #allocation2 [shape = 'u8[1024]{0}', space=vmem, size = 0x400, scoped, tag = 'output window, operand 0, single buffered']
    #allocation3 [shape = 's32[1]{0}', space=sflag, size = 0x4, scoped, tag = 'scoped memory for xlnet_multilabel_forward.1']
    %10 = vsyncpa [#allocation3], 0
    // Predicated region
    $region2: #{xlnet_multilabel_forward.1} parent=1 // pred_check
      _
    $region3: #{xlnet_multilabel_forward.1} parent=1 // pred_check_branch
      %12 = sbr.rel (0) target = $region5
    $region4: #{xlnet_multilabel_forward.1} parent=1 // pred_region
      _
    $region5: #{xlnet_multilabel_forward.1} parent=1 // pred_fallthru
      _
    // Predicated region
    $region6: #{xlnet_multilabel_forward.1} parent=1 // pred_check
      _
    $region7: #{xlnet_multilabel_forward.1} parent=1 // pred_check_branch
      %14 = sbr.rel (0) target = $region9
    $region8: #{xlnet_multilabel_forward.1} parent=1 // pred_region
      _
    $region9: #{xlnet_multilabel_forward.1} parent=1 // pred_fallthru
      _
    // Predicated region
    $region10: #{xlnet_multilabel_forward.1} parent=1 // pred_check
      _
    $region11: #{xlnet_multilabel_forward.1} parent=1 // pred_check_branch
      %16 = sbr.rel (0) target = $region13
    $region12: #{xlnet_multilabel_forward.1} parent=1 // pred_region
      _
    $region13: #{xlnet_multilabel_forward.1} parent=1 // pred_fallthru
      _
    // Predicated region
    $region14: #{xlnet_multilabel_forward.1} parent=1 // pred_check
      _
    $region15: #{xlnet_multilabel_forward.1} parent=1 // pred_check_branch
      %18 = sbr.rel (0) target = $region17
    $region16: #{xlnet_multilabel_forward.1} parent=1 // pred_region
      _
    $region17: #{xlnet_multilabel_forward.1} parent=1 // pred_fallthru
      _
    // Predicated region
    $region18: #{xlnet_multilabel_forward.1} parent=1 // pred_check
      _
    $region19: #{xlnet_multilabel_forward.1} parent=1 // pred_check_branch
      %20 = sbr.rel (0) target = $region21
    $region20: #{xlnet_multilabel_forward.1} parent=1 // pred_region
      _
    $region21: #{xlnet_multilabel_forward.1} parent=1 // pred_fallthru
      _
    %v22 = vld [vmem:[%s0] sm:$0xff]
    %v23 = vld [vmem:[%s0 + $0x8] sm:$0xff]
    %v24 = vld [vmem:[%s0 + $0x10] sm:$0xff]
    %v25 = vld [vmem:[%s0 + $0x18] sm:$0xff]
    %v26 = vld [vmem:[%s0 + $0x20] sm:$0x3]
    %v27 = vpack.c.bf16 %v23, %v22
    %v28 = vld [vmem:[%s1] sm:$0xff]
    %v29 = vld [vmem:[%s1 + $0x8] sm:$0xf]
    %v30 = vld [vmem:[%s1 + $0x18] sm:$0xff]
    %v31 = vld [vmem:[%s1 + $0x20] sm:$0xf]
    %v32 = vld [vmem:[%s1 + $0x30] sm:$0xff]
    %v33 = vld [vmem:[%s1 + $0x38] sm:$0xf]
    %v34 = vld [vmem:[%s1 + $0x48] sm:$0xff]
    %v35 = vld [vmem:[%s1 + $0x50] sm:$0xf]
    %v36 = vld [vmem:[%s1 + $0x60] sm:$0xff]
    %v37 = vld [vmem:[%s1 + $0x68] sm:$0xf]
    %v38 = vld [vmem:[%s1 + $0x78] sm:$0xff]
    %v39 = vld [vmem:[%s1 + $0x80] sm:$0xf]
    %v40 = vld [vmem:[%s1 + $0x90] sm:$0xff]
    %v41 = vld [vmem:[%s1 + $0x98] sm:$0xf]
    %v42 = vld [vmem:[%s1 + $0xa8] sm:$0xff]
    %v43 = vld [vmem:[%s1 + $0xb0] sm:$0xf]
    %v44 = vld [vmem:[%s1 + $0xc0] sm:$0xff]
    %v45 = vld [vmem:[%s1 + $0xc8] sm:$0xf]
    %v46 = vld [vmem:[%s1 + $0xd8] sm:$0xff]
    %v47 = vld [vmem:[%s1 + $0xe0] sm:$0xf]
    %v48 = vld [vmem:[%s1 + $0xf0] sm:$0xff]
    %v49 = vld [vmem:[%s1 + $0xf8] sm:$0xf]
    %v50 = vld [vmem:[%s1 + $0x108] sm:$0xff]
    %v51 = vld [vmem:[%s1 + $0x110] sm:$0xf]
    %v52 = vld [vmem:[%s1 + $0x120] sm:$0xff]
    %v53 = vld [vmem:[%s1 + $0x128] sm:$0xf]
    %v54 = vld [vmem:[%s1 + $0x138] sm:$0xff]
    %v55 = vld [vmem:[%s1 + $0x140] sm:$0xf]
    %v56 = vld [vmem:[%s1 + $0x150] sm:$0xff]
    %v57 = vld [vmem:[%s1 + $0x158] sm:$0xf]
    %v58 = vld [vmem:[%s1 + $0x168] sm:$0xff]
    %v59 = vld [vmem:[%s1 + $0x170] sm:$0xf]
    %v92 = vunpack.c.l.b16 %v28
    %v93 = vunpack.c.h.b16 %v28
    %v94 = vunpack.c.l.b16 %v29
    %v95 = vunpack.c.l.b16 %v30
    %v96 = vunpack.c.h.b16 %v30
    %v97 = vunpack.c.l.b16 %v31
    %v98 = vunpack.c.l.b16 %v32
    %v99 = vunpack.c.h.b16 %v32
    %v100 = vunpack.c.l.b16 %v33
    %v101 = vunpack.c.l.b16 %v34
    %v102 = vunpack.c.h.b16 %v34
    %v103 = vunpack.c.l.b16 %v35
    %v104 = vunpack.c.l.b16 %v36
    %v105 = vunpack.c.h.b16 %v36
    %v106 = vunpack.c.l.b16 %v37
    %v107 = vunpack.c.l.b16 %v38
    %v108 = vunpack.c.h.b16 %v38
    %v109 = vunpack.c.l.b16 %v39
    %v110 = vunpack.c.l.b16 %v40
    %v111 = vunpack.c.h.b16 %v40
    %v112 = vunpack.c.l.b16 %v41
    %v113 = vunpack.c.l.b16 %v42
    %v114 = vunpack.c.h.b16 %v42
    %v115 = vunpack.c.l.b16 %v43
    %v116 = vunpack.c.l.b16 %v44
    %v117 = vunpack.c.h.b16 %v44
    %v118 = vunpack.c.l.b16 %v45
    %v119 = vunpack.c.l.b16 %v46
    %v120 = vunpack.c.h.b16 %v46
    %v121 = vunpack.c.l.b16 %v47
    %v122 = vunpack.c.l.b16 %v48
    %v123 = vunpack.c.h.b16 %v48
    %v124 = vunpack.c.l.b16 %v49
    %v125 = vunpack.c.l.b16 %v50
    %v126 = vunpack.c.h.b16 %v50
    %v127 = vunpack.c.l.b16 %v51
    %v128 = vunpack.c.l.b16 %v52
    %v129 = vunpack.c.h.b16 %v52
    %v130 = vunpack.c.l.b16 %v53
    %v131 = vunpack.c.l.b16 %v54
    %v132 = vunpack.c.h.b16 %v54
    %v133 = vunpack.c.l.b16 %v55
    %v134 = vunpack.c.l.b16 %v56
    %v135 = vunpack.c.h.b16 %v56
    %v136 = vunpack.c.l.b16 %v57
    %v137 = vunpack.c.l.b16 %v58
    %v138 = vunpack.c.h.b16 %v58
    %v139 = vunpack.c.l.b16 %v59
    %v140 = vpack.c.b16 %v95, %v92
    %v141 = vpack.c.b16 %v96, %v93
    %v142 = vpack.c.b16 %v97, %v94
    %v143 = vpack.c.b16 %v101, %v98
    %v144 = vpack.c.b16 %v102, %v99
    %v145 = vpack.c.b16 %v103, %v100
    %v146 = vpack.c.b16 %v107, %v104
    %v147 = vpack.c.b16 %v108, %v105
    %v148 = vpack.c.b16 %v109, %v106
    %v149 = vpack.c.b16 %v113, %v110
    %v150 = vpack.c.b16 %v114, %v111
    %v151 = vpack.c.b16 %v115, %v112
    %v152 = vpack.c.b16 %v119, %v116
    %v153 = vpack.c.b16 %v120, %v117
    %v154 = vpack.c.b16 %v121, %v118
    %v155 = vpack.c.b16 %v125, %v122
    %v156 = vpack.c.b16 %v126, %v123
    %v157 = vpack.c.b16 %v127, %v124
    %v158 = vpack.c.b16 %v131, %v128
    %v159 = vpack.c.b16 %v132, %v129
    %v160 = vpack.c.b16 %v133, %v130
    %v161 = vpack.c.b16 %v137, %v134
    %v162 = vpack.c.b16 %v138, %v135
    %v163 = vpack.c.b16 %v139, %v136
    %188 = vmatpush.bf16.msra.mxu0 %v161
    %189 = vmatpush.bf16.msra.mxu0 %v158
    %190 = vmatpush.bf16.msra.mxu0 %v155
    %191 = vmatpush.bf16.msra.mxu0 %v152
    %192 = vmatpush.bf16.msra.mxu0 %v149
    %193 = vmatpush.bf16.msra.mxu0 %v146
    %194 = vmatpush.bf16.msra.mxu0 %v143
    %195 = vmatpush.bf16.msra.mxu0 %v140
    %196 = vmatmul.bf16.gmra.mxu0 %v27
    %v197 = vpop.f32.mrf.mxu0
    %v198 = vadd.f32 0.0, %v197
    %v199 = vpop.f32.mrf.mxu0
    %v200 = vadd.f32 0.0, %v199
    %201 = vdwg.mxu0
    %202 = vmatpush.bf16.msra.mxu0 %v162
    %203 = vmatpush.bf16.msra.mxu0 %v159
    %204 = vmatpush.bf16.msra.mxu0 %v156
    %205 = vmatpush.bf16.msra.mxu0 %v153
    %206 = vmatpush.bf16.msra.mxu0 %v150
    %207 = vmatpush.bf16.msra.mxu0 %v147
    %208 = vmatpush.bf16.msra.mxu0 %v144
    %209 = vmatpush.bf16.msra.mxu0 %v141
    %210 = vmatmul.bf16.gmra.mxu0 %v27
    %v211 = vpop.f32.mrf.mxu0
    %v212 = vadd.f32 0.0, %v211
    %v213 = vpop.f32.mrf.mxu0
    %v214 = vadd.f32 0.0, %v213
    %215 = vdwg.mxu0
    %216 = vmatpush.bf16.msra.mxu0 %v163
    %217 = vmatpush.bf16.msra.mxu0 %v160
    %218 = vmatpush.bf16.msra.mxu0 %v157
    %219 = vmatpush.bf16.msra.mxu0 %v154
    %220 = vmatpush.bf16.msra.mxu0 %v151
    %221 = vmatpush.bf16.msra.mxu0 %v148
    %222 = vmatpush.bf16.msra.mxu0 %v145
    %223 = vmatpush.bf16.msra.mxu0 %v142
    %224 = vmatmul.bf16.gmra.mxu0 %v27
    %v225 = vpop.f32.mrf.mxu0
    %v226 = vadd.f32 0.0, %v225
    %v227 = vpop.f32.mrf.mxu0
    %v228 = vadd.f32 0.0, %v227
    %229 = vdwg.mxu0
    %v230 = vld [vmem:[%s3] ss:$0 sm:$0xff]
    %v231 = vld [vmem:[%s3 + $0x1] ss:$0 sm:$0xff]
    %v232 = vadd.f32 %v198, %v230
    %v233 = vadd.f32 %v200, %v230
    %v234 = vpack.c.bf16 %v233, %v232
    %v235 = vpack.c.bf16 %v214, %v212
    %v236 = vadd.f32 %v198, %v231
    %v237 = vadd.f32 %v200, %v231
    %v238 = vpack.c.bf16 %v237, %v236
    %v239 = vld [vmem:[%s1 + $0x14] sm:$0xf]
    %v240 = vld [vmem:[%s1 + $0x2c] sm:$0xf]
    %v241 = vld [vmem:[%s1 + $0x44] sm:$0xf]
    %v242 = vld [vmem:[%s1 + $0x5c] sm:$0xf]
    %v243 = vld [vmem:[%s1 + $0x74] sm:$0xf]
    %v244 = vld [vmem:[%s1 + $0x8c] sm:$0xf]
    %v245 = vld [vmem:[%s1 + $0xa4] sm:$0xf]
    %v246 = vld [vmem:[%s1 + $0xbc] sm:$0xf]
    %v247 = vld [vmem:[%s1 + $0xd4] sm:$0xf]
    %v248 = vld [vmem:[%s1 + $0xec] sm:$0xf]
    %v249 = vld [vmem:[%s1 + $0x104] sm:$0xf]
    %v250 = vld [vmem:[%s1 + $0x11c] sm:$0xf]
    %v251 = vld [vmem:[%s1 + $0x134] sm:$0xf]
    %v252 = vld [vmem:[%s1 + $0x14c] sm:$0xf]
    %v253 = vld [vmem:[%s1 + $0x164] sm:$0xf]
    %v254 = vld [vmem:[%s1 + $0x17c] sm:$0xf]
    %v271 = vunpack.c.l.b16 %v239
    %v272 = vunpack.c.l.b16 %v240
    %v273 = vunpack.c.l.b16 %v241
    %v274 = vunpack.c.l.b16 %v242
    %v275 = vunpack.c.l.b16 %v243
    %v276 = vunpack.c.l.b16 %v244
    %v277 = vunpack.c.l.b16 %v245
    %v278 = vunpack.c.l.b16 %v246
    %v279 = vunpack.c.l.b16 %v247
    %v280 = vunpack.c.l.b16 %v248
    %v281 = vunpack.c.l.b16 %v249
    %v282 = vunpack.c.l.b16 %v250
    %v283 = vunpack.c.l.b16 %v251
    %v284 = vunpack.c.l.b16 %v252
    %v285 = vunpack.c.l.b16 %v253
    %v286 = vunpack.c.l.b16 %v254
    %v287 = vpack.c.b16 %v272, %v271
    %v288 = vpack.c.b16 %v274, %v273
    %v289 = vpack.c.b16 %v276, %v275
    %v290 = vpack.c.b16 %v278, %v277
    %v291 = vpack.c.b16 %v280, %v279
    %v292 = vpack.c.b16 %v282, %v281
    %v293 = vpack.c.b16 %v284, %v283
    %v294 = vpack.c.b16 %v286, %v285
    %vm295 = vcmask 523264
    %v297 = vsel %vm295, %v238, 0
    %v300 = vsel %vm295, %v287, 0
    %v303 = vsel %vm295, %v288, 0
    %v306 = vsel %vm295, %v289, 0
    %v309 = vsel %vm295, %v290, 0
    %v312 = vsel %vm295, %v291, 0
    %v315 = vsel %vm295, %v292, 0
    %v318 = vsel %vm295, %v293, 0
    %v321 = vsel %vm295, %v294, 0
    %323 = vmatpush.bf16.xpose.msra.mxu0 %v321
    %324 = vmatpush.bf16.xpose.msra.mxu0 %v318
    %325 = vmatpush.bf16.xpose.msra.mxu0 %v315
    %326 = vmatpush.bf16.xpose.msra.mxu0 %v312
    %327 = vmatpush.bf16.xpose.msra.mxu0 %v309
    %328 = vmatpush.bf16.xpose.msra.mxu0 %v306
    %329 = vmatpush.bf16.xpose.msra.mxu0 %v303
    %330 = vmatpush.bf16.xpose.msra.mxu0 %v300
    %331 = vmatmul.bf16.gmra.mxu0 %v297
    %v332 = vpop.f32.mrf.mxu0
    %v333 = vadd.f32 0.0, %v332
    %v334 = vpop.f32.mrf.mxu0
    %v335 = vadd.f32 0.0, %v334
    %336 = vdwg.mxu0
    %s338 = sor.u32 256, 120
    %339 = vrot.lane.b32.xlu0 %v333, %s338
    %v340 = vpop.permute.xlu0 %339
    %342 = vrot.lane.b32.xlu0 %v335, 256
    %v343 = vpop.permute.xlu0 %342
    %v345 = vsel %vm295, %v234, 0
    %v348 = vsel %vm295, %v235, 0
    %350 = vmatpush.bf16.xpose.msra.mxu0 0
    %351 = vmatpush.bf16.xpose.msra.mxu0 0
    %352 = vmatpush.bf16.xpose.msra.mxu0 0
    %353 = vmatpush.bf16.xpose.msra.mxu0 0
    %354 = vmatpush.bf16.xpose.msra.mxu0 0
    %355 = vmatpush.bf16.xpose.msra.mxu0 0
    %356 = vmatpush.bf16.xpose.msra.mxu0 0
    %357 = vmatpush.bf16.xpose.msra.mxu0 %v348
    %358 = vmatmul.bf16.gmra.mxu0 %v345
    %v359 = vpop.f32.mrf.mxu0
    %v360 = vadd.f32 %v340, %v359
    %v361 = vpop.f32.mrf.mxu0
    %v362 = vadd.f32 %v343, %v361
    %363 = vdwg.mxu0
    %v364 = vmul.f32 %v360, 0.125
    %v365 = vmul.f32 %v362, 0.125
    %v366 = vadd.f32 %v364, %v24
    %v367 = vadd.f32 %v365, %v25
    %vm368 = vcmask 130048
    %v369 = vsel %vm368, %v366, -inf
    %370 = vmax.xlane.f32.xlu0 %v369
    %v371 = vpop.xlane.xlu0 %370
    %v372 = vsel %vm368, %v367, -inf
    %373 = vmax.xlane.f32.xlu0 %v372
    %v374 = vpop.xlane.xlu0 %373
    %v375 = vsub.f32 %v366, %v371
    %v376 = vsub.f32 %v367, %v374
    %v377 = vmul.f32 %v375, 1.442695
    %v378 = vpow.pop %v377
    %v379 = vmul.f32 %v376, 1.442695
    %v380 = vpow.pop %v379
    %v381 = vsel %vm368, %v378, 0.0
    %382 = vadd.xlane.f32.xlu0 %v381
    %v383 = vpop.xlane.xlu0 %382
    %v384 = vsel %vm368, %v380, 0.0
    %385 = vadd.xlane.f32.xlu0 %v384
    %v386 = vpop.xlane.xlu0 %385
    %v387 = vrcp.pop %v383
    %v388 = vrcp.pop %v386
    %v389 = vmul.f32 %v378, %v387
    %v390 = vmul.f32 %v380, %v388
    %v391 = vpack.c.bf16 %v390, %v389
    %v392 = vpack.c.bf16 %v228, %v226
    %v394 = vsel %vm368, %v391, 0
    %396 = vmatpush.bf16.msra.mxu0 0
    %397 = vmatpush.bf16.msra.mxu0 0
    %398 = vmatpush.bf16.msra.mxu0 0
    %399 = vmatpush.bf16.msra.mxu0 0
    %400 = vmatpush.bf16.msra.mxu0 0
    %401 = vmatpush.bf16.msra.mxu0 0
    %402 = vmatpush.bf16.msra.mxu0 0
    %403 = vmatpush.bf16.msra.mxu0 %v392
    %404 = vmatmul.bf16.gmra.mxu0 %v394
    %v405 = vpop.f32.mrf.mxu0
    %v406 = vadd.f32 0.0, %v405
    %v407 = vpop.f32.mrf.mxu0
    %v408 = vadd.f32 0.0, %v407
    %409 = vdwg.mxu0
    %v410 = vpack.c.bf16 %v408, %v406
    %v411 = vld [vmem:[%s2] sm:$0xf]
    %v412 = vld [vmem:[%s2 + $0x4] sm:$0xf]
    %v413 = vld [vmem:[%s2 + $0x8] sm:$0xf]
    %v414 = vld [vmem:[%s2 + $0xc] sm:$0xf]
    %v415 = vld [vmem:[%s2 + $0x10] sm:$0xf]
    %v416 = vld [vmem:[%s2 + $0x14] sm:$0xf]
    %v417 = vld [vmem:[%s2 + $0x18] sm:$0xf]
    %v418 = vld [vmem:[%s2 + $0x1c] sm:$0xf]
    %420 = vrot.lane.b32.xlu0 %v238, 64
    %v421 = vpop.permute.xlu0 %420
    %422 = vrot.lane.b32.xlu0 %v287, 64
    %v423 = vpop.permute.xlu0 %422
    %424 = vrot.lane.b32.xlu0 %v288, 64
    %v425 = vpop.permute.xlu0 %424
    %426 = vrot.lane.b32.xlu0 %v289, 64
    %v427 = vpop.permute.xlu0 %426
    %428 = vrot.lane.b32.xlu0 %v290, 64
    %v429 = vpop.permute.xlu0 %428
    %430 = vrot.lane.b32.xlu0 %v291, 64
    %v431 = vpop.permute.xlu0 %430
    %432 = vrot.lane.b32.xlu0 %v292, 64
    %v433 = vpop.permute.xlu0 %432
    %434 = vrot.lane.b32.xlu0 %v293, 64
    %v435 = vpop.permute.xlu0 %434
    %436 = vrot.lane.b32.xlu0 %v294, 64
    %v437 = vpop.permute.xlu0 %436
    %v439 = vsel %vm295, %v421, 0
    %v442 = vsel %vm295, %v423, 0
    %v445 = vsel %vm295, %v425, 0
    %v448 = vsel %vm295, %v427, 0
    %v451 = vsel %vm295, %v429, 0
    %v454 = vsel %vm295, %v431, 0
    %v457 = vsel %vm295, %v433, 0
    %v460 = vsel %vm295, %v435, 0
    %v463 = vsel %vm295, %v437, 0
    %465 = vmatpush.bf16.xpose.msra.mxu0 %v463
    %466 = vmatpush.bf16.xpose.msra.mxu0 %v460
    %467 = vmatpush.bf16.xpose.msra.mxu0 %v457
    %468 = vmatpush.bf16.xpose.msra.mxu0 %v454
    %469 = vmatpush.bf16.xpose.msra.mxu0 %v451
    %470 = vmatpush.bf16.xpose.msra.mxu0 %v448
    %471 = vmatpush.bf16.xpose.msra.mxu0 %v445
    %472 = vmatpush.bf16.xpose.msra.mxu0 %v442
    %473 = vmatmul.bf16.gmra.mxu0 %v439
    %v474 = vpop.f32.mrf.mxu0
    %v475 = vadd.f32 0.0, %v474
    %v476 = vpop.f32.mrf.mxu0
    %v477 = vadd.f32 0.0, %v476
    %478 = vdwg.mxu0
    %s480 = sor.u32 256, 120
    %481 = vrot.lane.b32.xlu0 %v475, %s480
    %v482 = vpop.permute.xlu0 %481
    %484 = vrot.lane.b32.xlu0 %v477, 256
    %v485 = vpop.permute.xlu0 %484
    %487 = vrot.lane.b32.xlu0 %v234, 64
    %v488 = vpop.permute.xlu0 %487
    %490 = vrot.lane.b32.xlu0 %v235, 64
    %v491 = vpop.permute.xlu0 %490
    %v493 = vsel %vm295, %v488, 0
    %v496 = vsel %vm295, %v491, 0
    %498 = vmatpush.bf16.xpose.msra.mxu0 0
    %499 = vmatpush.bf16.xpose.msra.mxu0 0
    %500 = vmatpush.bf16.xpose.msra.mxu0 0
    %501 = vmatpush.bf16.xpose.msra.mxu0 0
    %502 = vmatpush.bf16.xpose.msra.mxu0 0
    %503 = vmatpush.bf16.xpose.msra.mxu0 0
    %504 = vmatpush.bf16.xpose.msra.mxu0 0
    %505 = vmatpush.bf16.xpose.msra.mxu0 %v496
    %506 = vmatmul.bf16.gmra.mxu0 %v493
    %v507 = vpop.f32.mrf.mxu0
    %v508 = vadd.f32 %v482, %v507
    %v509 = vpop.f32.mrf.mxu0
    %v510 = vadd.f32 %v485, %v509
    %511 = vdwg.mxu0
    %v512 = vmul.f32 %v508, 0.125
    %v513 = vmul.f32 %v510, 0.125
    %v514 = vadd.f32 %v512, %v24
    %v515 = vadd.f32 %v513, %v25
    %v516 = vsel %vm368, %v514, -inf
    %517 = vmax.xlane.f32.xlu0 %v516
    %v518 = vpop.xlane.xlu0 %517
    %v519 = vsel %vm368, %v515, -inf
    %520 = vmax.xlane.f32.xlu0 %v519
    %v521 = vpop.xlane.xlu0 %520
    %v522 = vsub.f32 %v514, %v518
    %v523 = vsub.f32 %v515, %v521
    %v524 = vmul.f32 %v522, 1.442695
    %v525 = vpow.pop %v524
    %v526 = vmul.f32 %v523, 1.442695
    %v527 = vpow.pop %v526
    %v528 = vsel %vm368, %v525, 0.0
    %529 = vadd.xlane.f32.xlu0 %v528
    %v530 = vpop.xlane.xlu0 %529
    %v531 = vsel %vm368, %v527, 0.0
    %532 = vadd.xlane.f32.xlu0 %v531
    %v533 = vpop.xlane.xlu0 %532
    %v534 = vrcp.pop %v530
    %v535 = vrcp.pop %v533
    %v536 = vmul.f32 %v525, %v534
    %v537 = vmul.f32 %v527, %v535
    %v538 = vpack.c.bf16 %v537, %v536
    %540 = vrot.lane.b32.xlu0 %v392, 64
    %v541 = vpop.permute.xlu0 %540
    %v544 = vsel %vm368, %v538, 0
    %546 = vmatpush.bf16.msra.mxu0 0
    %547 = vmatpush.bf16.msra.mxu0 0
    %548 = vmatpush.bf16.msra.mxu0 0
    %549 = vmatpush.bf16.msra.mxu0 0
    %550 = vmatpush.bf16.msra.mxu0 0
    %551 = vmatpush.bf16.msra.mxu0 0
    %552 = vmatpush.bf16.msra.mxu0 0
    %553 = vmatpush.bf16.msra.mxu0 %v541
    %554 = vmatmul.bf16.gmra.mxu0 %v544
    %v555 = vpop.f32.mrf.mxu0
    %v556 = vadd.f32 0.0, %v555
    %v557 = vpop.f32.mrf.mxu0
    %v558 = vadd.f32 0.0, %v557
    %559 = vdwg.mxu0
    %v560 = vpack.c.bf16 %v558, %v556
    %v561 = vld [vmem:[%s2 + $0x20] sm:$0xf]
    %v562 = vld [vmem:[%s2 + $0x24] sm:$0xf]
    %v563 = vld [vmem:[%s2 + $0x28] sm:$0xf]
    %v564 = vld [vmem:[%s2 + $0x2c] sm:$0xf]
    %v565 = vld [vmem:[%s2 + $0x30] sm:$0xf]
    %v566 = vld [vmem:[%s2 + $0x34] sm:$0xf]
    %v567 = vld [vmem:[%s2 + $0x38] sm:$0xf]
    %v568 = vld [vmem:[%s2 + $0x3c] sm:$0xf]
    %v577 = vunpack.c.l.b16 %v561
    %v578 = vunpack.c.l.b16 %v562
    %v579 = vunpack.c.l.b16 %v563
    %v580 = vunpack.c.l.b16 %v564
    %v581 = vunpack.c.l.b16 %v565
    %v582 = vunpack.c.l.b16 %v566
    %v583 = vunpack.c.l.b16 %v567
    %v584 = vunpack.c.l.b16 %v568
    %v585 = vpack.c.b16 %v578, %v577
    %v586 = vpack.c.b16 %v580, %v579
    %v587 = vpack.c.b16 %v582, %v581
    %v588 = vpack.c.b16 %v584, %v583
    %v594 = vsel %vm295, %v560, 0
    %596 = vmatpush.bf16.msra.mxu0 0
    %597 = vmatpush.bf16.msra.mxu0 0
    %598 = vmatpush.bf16.msra.mxu0 0
    %599 = vmatpush.bf16.msra.mxu0 0
    %600 = vmatpush.bf16.msra.mxu0 %v588
    %601 = vmatpush.bf16.msra.mxu0 %v587
    %602 = vmatpush.bf16.msra.mxu0 %v586
    %603 = vmatpush.bf16.msra.mxu0 %v585
    %604 = vmatmul.bf16.gmra.mxu0 %v594
    %v605 = vpop.f32.mrf.mxu0
    %v606 = vadd.f32 0.0, %v605
    %v607 = vpop.f32.mrf.mxu0
    %v608 = vadd.f32 0.0, %v607
    %609 = vdwg.mxu0
    %v618 = vunpack.c.l.b16 %v411
    %v619 = vunpack.c.l.b16 %v412
    %v620 = vunpack.c.l.b16 %v413
    %v621 = vunpack.c.l.b16 %v414
    %v622 = vunpack.c.l.b16 %v415
    %v623 = vunpack.c.l.b16 %v416
    %v624 = vunpack.c.l.b16 %v417
    %v625 = vunpack.c.l.b16 %v418
    %v626 = vpack.c.b16 %v619, %v618
    %v627 = vpack.c.b16 %v621, %v620
    %v628 = vpack.c.b16 %v623, %v622
    %v629 = vpack.c.b16 %v625, %v624
    %v635 = vsel %vm295, %v410, 0
    %637 = vmatpush.bf16.msra.mxu0 0
    %638 = vmatpush.bf16.msra.mxu0 0
    %639 = vmatpush.bf16.msra.mxu0 0
    %640 = vmatpush.bf16.msra.mxu0 0
    %641 = vmatpush.bf16.msra.mxu0 %v629
    %642 = vmatpush.bf16.msra.mxu0 %v628
    %643 = vmatpush.bf16.msra.mxu0 %v627
    %644 = vmatpush.bf16.msra.mxu0 %v626
    %645 = vmatmul.bf16.gmra.mxu0 %v635
    %v646 = vpop.f32.mrf.mxu0
    %v647 = vadd.f32 %v606, %v646
    %v648 = vpop.f32.mrf.mxu0
    %v649 = vadd.f32 %v608, %v648
    %650 = vdwg.mxu0
    %v651 = vadd.f32 %v647, %v22
    %v652 = vadd.f32 %v649, %v23
    %v653 = vld [vmem:[%s3 + $0x2] ss:$0 sm:$0xff]
    %v654 = vld [vmem:[%s3 + $0x3] ss:$0 sm:$0xff]
    %655 = vadd.xlane.f32.xlu0 %v651
    %v656 = vpop.xlane.xlu0 %655
    %657 = vadd.xlane.f32.xlu0 %v652
    %v658 = vpop.xlane.xlu0 %657
    %v659 = vrcp.pop 128.0
    %v660 = vmul.f32 128.0, %v659
    %v661 = vsub.f32 1.0, %v660
    %v662 = vmul.f32 %v659, %v661
    %v663 = vadd.f32 %v659, %v662
    %vm664 = vweird.f32 %v659
    %v665 = vsel %vm664, %v659, %v663
    %v666 = vmul.f32 %v656, %v665
    %v667 = vmul.f32 %v658, %v665
    %v668 = vsub.f32 %v651, %v666
    %v669 = vsub.f32 %v652, %v667
    %v670 = vmul.f32 %v668, %v668
    %v671 = vmul.f32 %v669, %v669
    %672 = vadd.xlane.f32.xlu0 %v670
    %v673 = vpop.xlane.xlu0 %672
    %674 = vadd.xlane.f32.xlu0 %v671
    %v675 = vpop.xlane.xlu0 %674
    %v676 = vmul.f32 %v673, %v665
    %v677 = vmul.f32 %v675, %v665
    %v678 = vadd.f32 %v676, 1e-12
    %v679 = vadd.f32 %v677, 1e-12
    %v680 = vrsqrt.pop %v678
    %v681 = vmul.f32 %v680, %v678
    %v682 = vmul.f32 %v681, %v680
    %v683 = vmul.f32 0.5, %v682
    %v684 = vsub.f32 1.5, %v683
    %v685 = vmul.f32 %v680, %v684
    %vm686 = vweird.f32 %v678
    %vm687 = vweird.f32 %v680
    %vm688 = vmor %vm686, %vm687
    %v689 = vsel %vm688, %v680, %v685
    %v690 = vrsqrt.pop %v679
    %v691 = vmul.f32 %v690, %v679
    %v692 = vmul.f32 %v691, %v690
    %v693 = vmul.f32 0.5, %v692
    %v694 = vsub.f32 1.5, %v693
    %v695 = vmul.f32 %v690, %v694
    %vm696 = vweird.f32 %v679
    %vm697 = vweird.f32 %v690
    %vm698 = vmor %vm696, %vm697
    %v699 = vsel %vm698, %v690, %v695
    %v700 = vmul.f32 %v668, %v689
    %v701 = vmul.f32 %v669, %v699
    %v702 = vmul.f32 %v700, %v653
    %v703 = vmul.f32 %v701, %v653
    %v704 = vadd.f32 %v702, %v654
    %v705 = vadd.f32 %v703, %v654
    %v706 = vpack.c.bf16 %v705, %v704
    %v707 = vld [vmem:[%s1 + $0xc] sm:$0xff]
    %v708 = vld [vmem:[%s1 + $0x24] sm:$0xff]
    %v709 = vld [vmem:[%s1 + $0x3c] sm:$0xff]
    %v710 = vld [vmem:[%s1 + $0x54] sm:$0xff]
    %v711 = vld [vmem:[%s1 + $0x6c] sm:$0xff]
    %v712 = vld [vmem:[%s1 + $0x84] sm:$0xff]
    %v713 = vld [vmem:[%s1 + $0x9c] sm:$0xff]
    %v714 = vld [vmem:[%s1 + $0xb4] sm:$0xff]
    %v715 = vld [vmem:[%s1 + $0xcc] sm:$0xff]
    %v716 = vld [vmem:[%s1 + $0xe4] sm:$0xff]
    %v717 = vld [vmem:[%s1 + $0xfc] sm:$0xff]
    %v718 = vld [vmem:[%s1 + $0x114] sm:$0xff]
    %v719 = vld [vmem:[%s1 + $0x12c] sm:$0xff]
    %v720 = vld [vmem:[%s1 + $0x144] sm:$0xff]
    %v721 = vld [vmem:[%s1 + $0x15c] sm:$0xff]
    %v722 = vld [vmem:[%s1 + $0x174] sm:$0xff]
    %s723 = scalar_lea.vmem %s3, 4
    %v724 = vld [vmem:[%s723] ss:$8 sm:$0x3]
    %v726 = vperm.slane %v724, 0
    %v727 = vperm.slane %v724, 1
    %v746 = vunpack.c.l.b16 %v707
    %v747 = vunpack.c.h.b16 %v707
    %v748 = vunpack.c.l.b16 %v708
    %v749 = vunpack.c.h.b16 %v708
    %v750 = vunpack.c.l.b16 %v709
    %v751 = vunpack.c.h.b16 %v709
    %v752 = vunpack.c.l.b16 %v710
    %v753 = vunpack.c.h.b16 %v710
    %v754 = vunpack.c.l.b16 %v711
    %v755 = vunpack.c.h.b16 %v711
    %v756 = vunpack.c.l.b16 %v712
    %v757 = vunpack.c.h.b16 %v712
    %v758 = vunpack.c.l.b16 %v713
    %v759 = vunpack.c.h.b16 %v713
    %v760 = vunpack.c.l.b16 %v714
    %v761 = vunpack.c.h.b16 %v714
    %v762 = vunpack.c.l.b16 %v715
    %v763 = vunpack.c.h.b16 %v715
    %v764 = vunpack.c.l.b16 %v716
    %v765 = vunpack.c.h.b16 %v716
    %v766 = vunpack.c.l.b16 %v717
    %v767 = vunpack.c.h.b16 %v717
    %v768 = vunpack.c.l.b16 %v718
    %v769 = vunpack.c.h.b16 %v718
    %v770 = vunpack.c.l.b16 %v719
    %v771 = vunpack.c.h.b16 %v719
    %v772 = vunpack.c.l.b16 %v720
    %v773 = vunpack.c.h.b16 %v720
    %v774 = vunpack.c.l.b16 %v721
    %v775 = vunpack.c.h.b16 %v721
    %v776 = vunpack.c.l.b16 %v722
    %v777 = vunpack.c.h.b16 %v722
    %v778 = vpack.c.b16 %v748, %v746
    %v779 = vpack.c.b16 %v749, %v747
    %v780 = vpack.c.b16 %v752, %v750
    %v781 = vpack.c.b16 %v753, %v751
    %v782 = vpack.c.b16 %v756, %v754
    %v783 = vpack.c.b16 %v757, %v755
    %v784 = vpack.c.b16 %v760, %v758
    %v785 = vpack.c.b16 %v761, %v759
    %v786 = vpack.c.b16 %v764, %v762
    %v787 = vpack.c.b16 %v765, %v763
    %v788 = vpack.c.b16 %v768, %v766
    %v789 = vpack.c.b16 %v769, %v767
    %v790 = vpack.c.b16 %v772, %v770
    %v791 = vpack.c.b16 %v773, %v771
    %v792 = vpack.c.b16 %v776, %v774
    %v793 = vpack.c.b16 %v777, %v775
    %810 = vmatpush.bf16.msra.mxu0 %v792
    %811 = vmatpush.bf16.msra.mxu0 %v790
    %812 = vmatpush.bf16.msra.mxu0 %v788
    %813 = vmatpush.bf16.msra.mxu0 %v786
    %814 = vmatpush.bf16.msra.mxu0 %v784
    %815 = vmatpush.bf16.msra.mxu0 %v782
    %816 = vmatpush.bf16.msra.mxu0 %v780
    %817 = vmatpush.bf16.msra.mxu0 %v778
    %818 = vmatmul.bf16.gmra.mxu0 %v706
    %v819 = vpop.f32.mrf.mxu0
    %v820 = vadd.f32 %v726, %v819
    %v821 = vpop.f32.mrf.mxu0
    %v822 = vadd.f32 %v726, %v821
    %823 = vdwg.mxu0
    %824 = vmatpush.bf16.msra.mxu0 %v793
    %825 = vmatpush.bf16.msra.mxu0 %v791
    %826 = vmatpush.bf16.msra.mxu0 %v789
    %827 = vmatpush.bf16.msra.mxu0 %v787
    %828 = vmatpush.bf16.msra.mxu0 %v785
    %829 = vmatpush.bf16.msra.mxu0 %v783
    %830 = vmatpush.bf16.msra.mxu0 %v781
    %831 = vmatpush.bf16.msra.mxu0 %v779
    %832 = vmatmul.bf16.gmra.mxu0 %v706
    %v833 = vpop.f32.mrf.mxu0
    %v834 = vadd.f32 %v727, %v833
    %v835 = vpop.f32.mrf.mxu0
    %v836 = vadd.f32 %v727, %v835
    %837 = vdwg.mxu0
    %v838 = vmul.f32 %v820, %v820
    %v839 = vmul.f32 %v834, %v834
    %v840 = vmul.f32 %v822, %v822
    %v841 = vmul.f32 %v836, %v836
    %v842 = vmul.f32 %v820, %v838
    %v843 = vmul.f32 %v834, %v839
    %v844 = vmul.f32 %v822, %v840
    %v845 = vmul.f32 %v836, %v841
    %v846 = vmul.f32 %v842, 0.044715
    %v847 = vmul.f32 %v843, 0.044715
    %v848 = vmul.f32 %v844, 0.044715
    %v849 = vmul.f32 %v845, 0.044715
    %v850 = vadd.f32 %v820, %v846
    %v851 = vadd.f32 %v834, %v847
    %v852 = vadd.f32 %v822, %v848
    %v853 = vadd.f32 %v836, %v849
    %v854 = vmul.f32 %v850, 0.7978846
    %v855 = vmul.f32 %v851, 0.7978846
    %v856 = vmul.f32 %v852, 0.7978846
    %v857 = vmul.f32 %v853, 0.7978846
    %v858 = vtanh.pop %v854
    %v859 = vtanh.pop %v855
    %v860 = vtanh.pop %v856
    %v861 = vtanh.pop %v857
    %v862 = vadd.f32 %v858, 1.0
    %v863 = vadd.f32 %v859, 1.0
    %v864 = vadd.f32 %v860, 1.0
    %v865 = vadd.f32 %v861, 1.0
    %v866 = vmul.f32 %v862, 0.5
    %v867 = vmul.f32 %v863, 0.5
    %v868 = vmul.f32 %v864, 0.5
    %v869 = vmul.f32 %v865, 0.5
    %v870 = vmul.f32 %v820, %v866
    %v871 = vmul.f32 %v834, %v867
    %v872 = vmul.f32 %v822, %v868
    %v873 = vmul.f32 %v836, %v869
    %v874 = vpack.c.bf16 %v872, %v870
    %v875 = vpack.c.bf16 %v873, %v871
    %v876 = vld [vmem:[%s2 + $0x40] sm:$0xf]
    %v877 = vld [vmem:[%s2 + $0x44] sm:$0xf]
    %v878 = vld [vmem:[%s2 + $0x48] sm:$0xf]
    %v879 = vld [vmem:[%s2 + $0x4c] sm:$0xf]
    %v880 = vld [vmem:[%s2 + $0x50] sm:$0xf]
    %v881 = vld [vmem:[%s2 + $0x54] sm:$0xf]
    %v882 = vld [vmem:[%s2 + $0x58] sm:$0xf]
    %v883 = vld [vmem:[%s2 + $0x5c] sm:$0xf]
    %v884 = vld [vmem:[%s2 + $0x60] sm:$0xf]
    %v885 = vld [vmem:[%s2 + $0x64] sm:$0xf]
    %v886 = vld [vmem:[%s2 + $0x68] sm:$0xf]
    %v887 = vld [vmem:[%s2 + $0x6c] sm:$0xf]
    %v888 = vld [vmem:[%s2 + $0x70] sm:$0xf]
    %v889 = vld [vmem:[%s2 + $0x74] sm:$0xf]
    %v890 = vld [vmem:[%s2 + $0x78] sm:$0xf]
    %v891 = vld [vmem:[%s2 + $0x7c] sm:$0xf]
    %v892 = vld [vmem:[%s2 + $0x80] sm:$0xf]
    %v893 = vld [vmem:[%s2 + $0x84] sm:$0xf]
    %v894 = vld [vmem:[%s2 + $0x88] sm:$0xf]
    %v895 = vld [vmem:[%s2 + $0x8c] sm:$0xf]
    %v896 = vld [vmem:[%s2 + $0x90] sm:$0xf]
    %v897 = vld [vmem:[%s2 + $0x94] sm:$0xf]
    %v898 = vld [vmem:[%s2 + $0x98] sm:$0xf]
    %v899 = vld [vmem:[%s2 + $0x9c] sm:$0xf]
    %v900 = vld [vmem:[%s2 + $0xa0] sm:$0xf]
    %v901 = vld [vmem:[%s2 + $0xa4] sm:$0xf]
    %v902 = vld [vmem:[%s2 + $0xa8] sm:$0xf]
    %v903 = vld [vmem:[%s2 + $0xac] sm:$0xf]
    %v904 = vld [vmem:[%s2 + $0xb0] sm:$0xf]
    %v905 = vld [vmem:[%s2 + $0xb4] sm:$0xf]
    %v906 = vld [vmem:[%s2 + $0xb8] sm:$0xf]
    %v907 = vld [vmem:[%s2 + $0xbc] sm:$0xf]
    %v908 = vld [vmem:[%s3 + $0x5] ss:$0 sm:$0xff]
    %v941 = vunpack.c.l.b16 %v876
    %v942 = vunpack.c.l.b16 %v877
    %v943 = vunpack.c.l.b16 %v878
    %v944 = vunpack.c.l.b16 %v879
    %v945 = vunpack.c.l.b16 %v880
    %v946 = vunpack.c.l.b16 %v881
    %v947 = vunpack.c.l.b16 %v882
    %v948 = vunpack.c.l.b16 %v883
    %v949 = vunpack.c.l.b16 %v884
    %v950 = vunpack.c.l.b16 %v885
    %v951 = vunpack.c.l.b16 %v886
    %v952 = vunpack.c.l.b16 %v887
    %v953 = vunpack.c.l.b16 %v888
    %v954 = vunpack.c.l.b16 %v889
    %v955 = vunpack.c.l.b16 %v890
    %v956 = vunpack.c.l.b16 %v891
    %v957 = vunpack.c.l.b16 %v892
    %v958 = vunpack.c.l.b16 %v893
    %v959 = vunpack.c.l.b16 %v894
    %v960 = vunpack.c.l.b16 %v895
    %v961 = vunpack.c.l.b16 %v896
    %v962 = vunpack.c.l.b16 %v897
    %v963 = vunpack.c.l.b16 %v898
    %v964 = vunpack.c.l.b16 %v899
    %v965 = vunpack.c.l.b16 %v900
    %v966 = vunpack.c.l.b16 %v901
    %v967 = vunpack.c.l.b16 %v902
    %v968 = vunpack.c.l.b16 %v903
    %v969 = vunpack.c.l.b16 %v904
    %v970 = vunpack.c.l.b16 %v905
    %v971 = vunpack.c.l.b16 %v906
    %v972 = vunpack.c.l.b16 %v907
    %v973 = vpack.c.b16 %v942, %v941
    %v974 = vpack.c.b16 %v944, %v943
    %v975 = vpack.c.b16 %v946, %v945
    %v976 = vpack.c.b16 %v948, %v947
    %v977 = vpack.c.b16 %v950, %v949
    %v978 = vpack.c.b16 %v952, %v951
    %v979 = vpack.c.b16 %v954, %v953
    %v980 = vpack.c.b16 %v956, %v955
    %v981 = vpack.c.b16 %v958, %v957
    %v982 = vpack.c.b16 %v960, %v959
    %v983 = vpack.c.b16 %v962, %v961
    %v984 = vpack.c.b16 %v964, %v963
    %v985 = vpack.c.b16 %v966, %v965
    %v986 = vpack.c.b16 %v968, %v967
    %v987 = vpack.c.b16 %v970, %v969
    %v988 = vpack.c.b16 %v972, %v971
    %1005 = vmatpush.bf16.msra.mxu0 %v980
    %1006 = vmatpush.bf16.msra.mxu0 %v979
    %1007 = vmatpush.bf16.msra.mxu0 %v978
    %1008 = vmatpush.bf16.msra.mxu0 %v977
    %1009 = vmatpush.bf16.msra.mxu0 %v976
    %1010 = vmatpush.bf16.msra.mxu0 %v975
    %1011 = vmatpush.bf16.msra.mxu0 %v974
    %1012 = vmatpush.bf16.msra.mxu0 %v973
    %1013 = vmatmul.bf16.gmra.mxu0 %v874
    %v1014 = vpop.f32.mrf.mxu0
    %v1015 = vadd.f32 %v908, %v1014
    %v1016 = vpop.f32.mrf.mxu0
    %v1017 = vadd.f32 %v908, %v1016
    %1018 = vdwg.mxu0
    %1019 = vmatpush.bf16.msra.mxu0 %v988
    %1020 = vmatpush.bf16.msra.mxu0 %v987
    %1021 = vmatpush.bf16.msra.mxu0 %v986
    %1022 = vmatpush.bf16.msra.mxu0 %v985
    %1023 = vmatpush.bf16.msra.mxu0 %v984
    %1024 = vmatpush.bf16.msra.mxu0 %v983
    %1025 = vmatpush.bf16.msra.mxu0 %v982
    %1026 = vmatpush.bf16.msra.mxu0 %v981
    %1027 = vmatmul.bf16.gmra.mxu0 %v875
    %v1028 = vpop.f32.mrf.mxu0
    %v1029 = vadd.f32 %v1015, %v1028
    %v1030 = vpop.f32.mrf.mxu0
    %v1031 = vadd.f32 %v1017, %v1030
    %1032 = vdwg.mxu0
    %v1033 = vadd.f32 %v1029, %v704
    %v1034 = vadd.f32 %v1031, %v705
    %v1035 = vld [vmem:[%s3 + $0x6] ss:$0 sm:$0xff]
    %v1036 = vld [vmem:[%s3 + $0x7] ss:$0 sm:$0xff]
    %1037 = vadd.xlane.f32.xlu0 %v1033
    %v1038 = vpop.xlane.xlu0 %1037
    %1039 = vadd.xlane.f32.xlu0 %v1034
    %v1040 = vpop.xlane.xlu0 %1039
    %v1041 = vmul.f32 %v1038, %v665
    %v1042 = vmul.f32 %v1040, %v665
    %v1043 = vsub.f32 %v1033, %v1041
    %v1044 = vsub.f32 %v1034, %v1042
    %v1045 = vmul.f32 %v1043, %v1043
    %v1046 = vmul.f32 %v1044, %v1044
    %1047 = vadd.xlane.f32.xlu0 %v1045
    %v1048 = vpop.xlane.xlu0 %1047
    %1049 = vadd.xlane.f32.xlu0 %v1046
    %v1050 = vpop.xlane.xlu0 %1049
    %v1051 = vmul.f32 %v1048, %v665
    %v1052 = vmul.f32 %v1050, %v665
    %v1053 = vadd.f32 %v1051, 1e-12
    %v1054 = vadd.f32 %v1052, 1e-12
    %v1055 = vrsqrt.pop %v1053
    %v1056 = vmul.f32 %v1055, %v1053
    %v1057 = vmul.f32 %v1056, %v1055
    %v1058 = vmul.f32 0.5, %v1057
    %v1059 = vsub.f32 1.5, %v1058
    %v1060 = vmul.f32 %v1055, %v1059
    %vm1061 = vweird.f32 %v1053
    %vm1062 = vweird.f32 %v1055
    %vm1063 = vmor %vm1061, %vm1062
    %v1064 = vsel %vm1063, %v1055, %v1060
    %v1065 = vrsqrt.pop %v1054
    %v1066 = vmul.f32 %v1065, %v1054
    %v1067 = vmul.f32 %v1066, %v1065
    %v1068 = vmul.f32 0.5, %v1067
    %v1069 = vsub.f32 1.5, %v1068
    %v1070 = vmul.f32 %v1065, %v1069
    %vm1071 = vweird.f32 %v1054
    %vm1072 = vweird.f32 %v1065
    %vm1073 = vmor %vm1071, %vm1072
    %v1074 = vsel %vm1073, %v1065, %v1070
    %v1075 = vmul.f32 %v1043, %v1064
    %v1076 = vmul.f32 %v1044, %v1074
    %v1077 = vmul.f32 %v1075, %v1035
    %v1078 = vmul.f32 %v1076, %v1035
    %v1079 = vadd.f32 %v1077, %v1036
    %v1080 = vadd.f32 %v1078, %v1036
    %v1081 = vpack.c.bf16 %v1080, %v1079
    %s1082 = scalar_lea.vmem %s1, 384
    %v1083 = vld [vmem:[%s1082] sm:$0xff]
    %v1084 = vld [vmem:[%s1082 + $0x8] sm:$0xf]
    %v1085 = vld [vmem:[%s1082 + $0x18] sm:$0xff]
    %v1086 = vld [vmem:[%s1082 + $0x20] sm:$0xf]
    %v1087 = vld [vmem:[%s1082 + $0x30] sm:$0xff]
    %v1088 = vld [vmem:[%s1082 + $0x38] sm:$0xf]
    %v1089 = vld [vmem:[%s1082 + $0x48] sm:$0xff]
    %v1090 = vld [vmem:[%s1082 + $0x50] sm:$0xf]
    %v1091 = vld [vmem:[%s1082 + $0x60] sm:$0xff]
    %v1092 = vld [vmem:[%s1082 + $0x68] sm:$0xf]
    %v1093 = vld [vmem:[%s1082 + $0x78] sm:$0xff]
    %v1094 = vld [vmem:[%s1082 + $0x80] sm:$0xf]
    %v1095 = vld [vmem:[%s1082 + $0x90] sm:$0xff]
    %v1096 = vld [vmem:[%s1082 + $0x98] sm:$0xf]
    %v1097 = vld [vmem:[%s1082 + $0xa8] sm:$0xff]
    %v1098 = vld [vmem:[%s1082 + $0xb0] sm:$0xf]
    %v1099 = vld [vmem:[%s1082 + $0xc0] sm:$0xff]
    %v1100 = vld [vmem:[%s1082 + $0xc8] sm:$0xf]
    %v1101 = vld [vmem:[%s1082 + $0xd8] sm:$0xff]
    %v1102 = vld [vmem:[%s1082 + $0xe0] sm:$0xf]
    %v1103 = vld [vmem:[%s1082 + $0xf0] sm:$0xff]
    %v1104 = vld [vmem:[%s1082 + $0xf8] sm:$0xf]
    %v1105 = vld [vmem:[%s1082 + $0x108] sm:$0xff]
    %v1106 = vld [vmem:[%s1082 + $0x110] sm:$0xf]
    %v1107 = vld [vmem:[%s1082 + $0x120] sm:$0xff]
    %v1108 = vld [vmem:[%s1082 + $0x128] sm:$0xf]
    %v1109 = vld [vmem:[%s1082 + $0x138] sm:$0xff]
    %v1110 = vld [vmem:[%s1082 + $0x140] sm:$0xf]
    %v1111 = vld [vmem:[%s1082 + $0x150] sm:$0xff]
    %v1112 = vld [vmem:[%s1082 + $0x158] sm:$0xf]
    %v1113 = vld [vmem:[%s1082 + $0x168] sm:$0xff]
    %v1114 = vld [vmem:[%s1082 + $0x170] sm:$0xf]
    %v1147 = vunpack.c.l.b16 %v1083
    %v1148 = vunpack.c.h.b16 %v1083
    %v1149 = vunpack.c.l.b16 %v1084
    %v1150 = vunpack.c.l.b16 %v1085
    %v1151 = vunpack.c.h.b16 %v1085
    %v1152 = vunpack.c.l.b16 %v1086
    %v1153 = vunpack.c.l.b16 %v1087
    %v1154 = vunpack.c.h.b16 %v1087
    %v1155 = vunpack.c.l.b16 %v1088
    %v1156 = vunpack.c.l.b16 %v1089
    %v1157 = vunpack.c.h.b16 %v1089
    %v1158 = vunpack.c.l.b16 %v1090
    %v1159 = vunpack.c.l.b16 %v1091
    %v1160 = vunpack.c.h.b16 %v1091
    %v1161 = vunpack.c.l.b16 %v1092
    %v1162 = vunpack.c.l.b16 %v1093
    %v1163 = vunpack.c.h.b16 %v1093
    %v1164 = vunpack.c.l.b16 %v1094
    %v1165 = vunpack.c.l.b16 %v1095
    %v1166 = vunpack.c.h.b16 %v1095
    %v1167 = vunpack.c.l.b16 %v1096
    %v1168 = vunpack.c.l.b16 %v1097
    %v1169 = vunpack.c.h.b16 %v1097
    %v1170 = vunpack.c.l.b16 %v1098
    %v1171 = vunpack.c.l.b16 %v1099
    %v1172 = vunpack.c.h.b16 %v1099
    %v1173 = vunpack.c.l.b16 %v1100
    %v1174 = vunpack.c.l.b16 %v1101
    %v1175 = vunpack.c.h.b16 %v1101
    %v1176 = vunpack.c.l.b16 %v1102
    %v1177 = vunpack.c.l.b16 %v1103
    %v1178 = vunpack.c.h.b16 %v1103
    %v1179 = vunpack.c.l.b16 %v1104
    %v1180 = vunpack.c.l.b16 %v1105
    %v1181 = vunpack.c.h.b16 %v1105
    %v1182 = vunpack.c.l.b16 %v1106
    %v1183 = vunpack.c.l.b16 %v1107
    %v1184 = vunpack.c.h.b16 %v1107
    %v1185 = vunpack.c.l.b16 %v1108
    %v1186 = vunpack.c.l.b16 %v1109
    %v1187 = vunpack.c.h.b16 %v1109
    %v1188 = vunpack.c.l.b16 %v1110
    %v1189 = vunpack.c.l.b16 %v1111
    %v1190 = vunpack.c.h.b16 %v1111
    %v1191 = vunpack.c.l.b16 %v1112
    %v1192 = vunpack.c.l.b16 %v1113
    %v1193 = vunpack.c.h.b16 %v1113
    %v1194 = vunpack.c.l.b16 %v1114
    %v1195 = vpack.c.b16 %v1150, %v1147
    %v1196 = vpack.c.b16 %v1151, %v1148
    %v1197 = vpack.c.b16 %v1152, %v1149
    %v1198 = vpack.c.b16 %v1156, %v1153
    %v1199 = vpack.c.b16 %v1157, %v1154
    %v1200 = vpack.c.b16 %v1158, %v1155
    %v1201 = vpack.c.b16 %v1162, %v1159
    %v1202 = vpack.c.b16 %v1163, %v1160
    %v1203 = vpack.c.b16 %v1164, %v1161
    %v1204 = vpack.c.b16 %v1168, %v1165
    %v1205 = vpack.c.b16 %v1169, %v1166
    %v1206 = vpack.c.b16 %v1170, %v1167
    %v1207 = vpack.c.b16 %v1174, %v1171
    %v1208 = vpack.c.b16 %v1175, %v1172
    %v1209 = vpack.c.b16 %v1176, %v1173
    %v1210 = vpack.c.b16 %v1180, %v1177
    %v1211 = vpack.c.b16 %v1181, %v1178
    %v1212 = vpack.c.b16 %v1182, %v1179
    %v1213 = vpack.c.b16 %v1186, %v1183
    %v1214 = vpack.c.b16 %v1187, %v1184
    %v1215 = vpack.c.b16 %v1188, %v1185
    %v1216 = vpack.c.b16 %v1192, %v1189
    %v1217 = vpack.c.b16 %v1193, %v1190
    %v1218 = vpack.c.b16 %v1194, %v1191
    %1243 = vmatpush.bf16.msra.mxu0 %v1216
    %1244 = vmatpush.bf16.msra.mxu0 %v1213
    %1245 = vmatpush.bf16.msra.mxu0 %v1210
    %1246 = vmatpush.bf16.msra.mxu0 %v1207
    %1247 = vmatpush.bf16.msra.mxu0 %v1204
    %1248 = vmatpush.bf16.msra.mxu0 %v1201
    %1249 = vmatpush.bf16.msra.mxu0 %v1198
    %1250 = vmatpush.bf16.msra.mxu0 %v1195
    %1251 = vmatmul.bf16.gmra.mxu0 %v1081
    %v1252 = vpop.f32.mrf.mxu0
    %v1253 = vadd.f32 0.0, %v1252
    %v1254 = vpop.f32.mrf.mxu0
    %v1255 = vadd.f32 0.0, %v1254
    %1256 = vdwg.mxu0
    %1257 = vmatpush.bf16.msra.mxu0 %v1217
    %1258 = vmatpush.bf16.msra.mxu0 %v1214
    %1259 = vmatpush.bf16.msra.mxu0 %v1211
    %1260 = vmatpush.bf16.msra.mxu0 %v1208
    %1261 = vmatpush.bf16.msra.mxu0 %v1205
    %1262 = vmatpush.bf16.msra.mxu0 %v1202
    %1263 = vmatpush.bf16.msra.mxu0 %v1199
    %1264 = vmatpush.bf16.msra.mxu0 %v1196
    %1265 = vmatmul.bf16.gmra.mxu0 %v1081
    %v1266 = vpop.f32.mrf.mxu0
    %v1267 = vadd.f32 0.0, %v1266
    %v1268 = vpop.f32.mrf.mxu0
    %v1269 = vadd.f32 0.0, %v1268
    %1270 = vdwg.mxu0
    %1271 = vmatpush.bf16.msra.mxu0 %v1218
    %1272 = vmatpush.bf16.msra.mxu0 %v1215
    %1273 = vmatpush.bf16.msra.mxu0 %v1212
    %1274 = vmatpush.bf16.msra.mxu0 %v1209
    %1275 = vmatpush.bf16.msra.mxu0 %v1206
    %1276 = vmatpush.bf16.msra.mxu0 %v1203
    %1277 = vmatpush.bf16.msra.mxu0 %v1200
    %1278 = vmatpush.bf16.msra.mxu0 %v1197
    %1279 = vmatmul.bf16.gmra.mxu0 %v1081
    %v1280 = vpop.f32.mrf.mxu0
    %v1281 = vadd.f32 0.0, %v1280
    %v1282 = vpop.f32.mrf.mxu0
    %v1283 = vadd.f32 0.0, %v1282
    %1284 = vdwg.mxu0
    %s1285 = scalar_lea.vmem %s3, 16
    %v1286 = vld [vmem:[%s1285] ss:$0 sm:$0xff]
    %v1287 = vld [vmem:[%s1285 + $0x1] ss:$0 sm:$0xff]
    %v1288 = vadd.f32 %v1253, %v1286
    %v1289 = vadd.f32 %v1255, %v1286
    %v1290 = vpack.c.bf16 %v1289, %v1288
    %v1291 = vpack.c.bf16 %v1269, %v1267
    %v1292 = vadd.f32 %v1253, %v1287
    %v1293 = vadd.f32 %v1255, %v1287
    %v1294 = vpack.c.bf16 %v1293, %v1292
    %v1295 = vld [vmem:[%s1082 + $0x14] sm:$0xf]
    %v1296 = vld [vmem:[%s1082 + $0x2c] sm:$0xf]
    %v1297 = vld [vmem:[%s1082 + $0x44] sm:$0xf]
    %v1298 = vld [vmem:[%s1082 + $0x5c] sm:$0xf]
    %v1299 = vld [vmem:[%s1082 + $0x74] sm:$0xf]
    %v1300 = vld [vmem:[%s1082 + $0x8c] sm:$0xf]
    %v1301 = vld [vmem:[%s1082 + $0xa4] sm:$0xf]
    %v1302 = vld [vmem:[%s1082 + $0xbc] sm:$0xf]
    %v1303 = vld [vmem:[%s1082 + $0xd4] sm:$0xf]
    %v1304 = vld [vmem:[%s1082 + $0xec] sm:$0xf]
    %v1305 = vld [vmem:[%s1082 + $0x104] sm:$0xf]
    %v1306 = vld [vmem:[%s1082 + $0x11c] sm:$0xf]
    %v1307 = vld [vmem:[%s1082 + $0x134] sm:$0xf]
    %v1308 = vld [vmem:[%s1082 + $0x14c] sm:$0xf]
    %v1309 = vld [vmem:[%s1082 + $0x164] sm:$0xf]
    %v1310 = vld [vmem:[%s1082 + $0x17c] sm:$0xf]
    %v1327 = vunpack.c.l.b16 %v1295
    %v1328 = vunpack.c.l.b16 %v1296
    %v1329 = vunpack.c.l.b16 %v1297
    %v1330 = vunpack.c.l.b16 %v1298
    %v1331 = vunpack.c.l.b16 %v1299
    %v1332 = vunpack.c.l.b16 %v1300
    %v1333 = vunpack.c.l.b16 %v1301
    %v1334 = vunpack.c.l.b16 %v1302
    %v1335 = vunpack.c.l.b16 %v1303
    %v1336 = vunpack.c.l.b16 %v1304
    %v1337 = vunpack.c.l.b16 %v1305
    %v1338 = vunpack.c.l.b16 %v1306
    %v1339 = vunpack.c.l.b16 %v1307
    %v1340 = vunpack.c.l.b16 %v1308
    %v1341 = vunpack.c.l.b16 %v1309
    %v1342 = vunpack.c.l.b16 %v1310
    %v1343 = vpack.c.b16 %v1328, %v1327
    %v1344 = vpack.c.b16 %v1330, %v1329
    %v1345 = vpack.c.b16 %v1332, %v1331
    %v1346 = vpack.c.b16 %v1334, %v1333
    %v1347 = vpack.c.b16 %v1336, %v1335
    %v1348 = vpack.c.b16 %v1338, %v1337
    %v1349 = vpack.c.b16 %v1340, %v1339
    %v1350 = vpack.c.b16 %v1342, %v1341
    %v1352 = vsel %vm295, %v1294, 0
    %v1355 = vsel %vm295, %v1343, 0
    %v1358 = vsel %vm295, %v1344, 0
    %v1361 = vsel %vm295, %v1345, 0
    %v1364 = vsel %vm295, %v1346, 0
    %v1367 = vsel %vm295, %v1347, 0
    %v1370 = vsel %vm295, %v1348, 0
    %v1373 = vsel %vm295, %v1349, 0
    %v1376 = vsel %vm295, %v1350, 0
    %1378 = vmatpush.bf16.xpose.msra.mxu0 %v1376
    %1379 = vmatpush.bf16.xpose.msra.mxu0 %v1373
    %1380 = vmatpush.bf16.xpose.msra.mxu0 %v1370
    %1381 = vmatpush.bf16.xpose.msra.mxu0 %v1367
    %1382 = vmatpush.bf16.xpose.msra.mxu0 %v1364
    %1383 = vmatpush.bf16.xpose.msra.mxu0 %v1361
    %1384 = vmatpush.bf16.xpose.msra.mxu0 %v1358
    %1385 = vmatpush.bf16.xpose.msra.mxu0 %v1355
    %1386 = vmatmul.bf16.gmra.mxu0 %v1352
    %v1387 = vpop.f32.mrf.mxu0
    %v1388 = vadd.f32 0.0, %v1387
    %v1389 = vpop.f32.mrf.mxu0
    %v1390 = vadd.f32 0.0, %v1389
    %1391 = vdwg.mxu0
    %s1393 = sor.u32 256, 120
    %1394 = vrot.lane.b32.xlu0 %v1388, %s1393
    %v1395 = vpop.permute.xlu0 %1394
    %1397 = vrot.lane.b32.xlu0 %v1390, 256
    %v1398 = vpop.permute.xlu0 %1397
    %v1400 = vsel %vm295, %v1290, 0
    %v1403 = vsel %vm295, %v1291, 0
    %1405 = vmatpush.bf16.xpose.msra.mxu0 0
    %1406 = vmatpush.bf16.xpose.msra.mxu0 0
    %1407 = vmatpush.bf16.xpose.msra.mxu0 0
    %1408 = vmatpush.bf16.xpose.msra.mxu0 0
    %1409 = vmatpush.bf16.xpose.msra.mxu0 0
    %1410 = vmatpush.bf16.xpose.msra.mxu0 0
    %1411 = vmatpush.bf16.xpose.msra.mxu0 0
    %1412 = vmatpush.bf16.xpose.msra.mxu0 %v1403
    %1413 = vmatmul.bf16.gmra.mxu0 %v1400
    %v1414 = vpop.f32.mrf.mxu0
    %v1415 = vadd.f32 %v1395, %v1414
    %v1416 = vpop.f32.mrf.mxu0
    %v1417 = vadd.f32 %v1398, %v1416
    %1418 = vdwg.mxu0
    %v1419 = vmul.f32 %v1415, 0.125
    %v1420 = vmul.f32 %v1417, 0.125
    %v1421 = vadd.f32 %v1419, %v24
    %v1422 = vadd.f32 %v1420, %v25
    %v1423 = vsel %vm368, %v1421, -inf
    %1424 = vmax.xlane.f32.xlu0 %v1423
    %v1425 = vpop.xlane.xlu0 %1424
    %v1426 = vsel %vm368, %v1422, -inf
    %1427 = vmax.xlane.f32.xlu0 %v1426
    %v1428 = vpop.xlane.xlu0 %1427
    %v1429 = vsub.f32 %v1421, %v1425
    %v1430 = vsub.f32 %v1422, %v1428
    %v1431 = vmul.f32 %v1429, 1.442695
    %v1432 = vpow.pop %v1431
    %v1433 = vmul.f32 %v1430, 1.442695
    %v1434 = vpow.pop %v1433
    %v1435 = vsel %vm368, %v1432, 0.0
    %1436 = vadd.xlane.f32.xlu0 %v1435
    %v1437 = vpop.xlane.xlu0 %1436
    %v1438 = vsel %vm368, %v1434, 0.0
    %1439 = vadd.xlane.f32.xlu0 %v1438
    %v1440 = vpop.xlane.xlu0 %1439
    %v1441 = vrcp.pop %v1437
    %v1442 = vrcp.pop %v1440
    %v1443 = vmul.f32 %v1432, %v1441
    %v1444 = vmul.f32 %v1434, %v1442
    %v1445 = vpack.c.bf16 %v1444, %v1443
    %v1446 = vpack.c.bf16 %v1283, %v1281
    %v1448 = vsel %vm368, %v1445, 0
    %1450 = vmatpush.bf16.msra.mxu0 0
    %1451 = vmatpush.bf16.msra.mxu0 0
    %1452 = vmatpush.bf16.msra.mxu0 0
    %1453 = vmatpush.bf16.msra.mxu0 0
    %1454 = vmatpush.bf16.msra.mxu0 0
    %1455 = vmatpush.bf16.msra.mxu0 0
    %1456 = vmatpush.bf16.msra.mxu0 0
    %1457 = vmatpush.bf16.msra.mxu0 %v1446
    %1458 = vmatmul.bf16.gmra.mxu0 %v1448
    %v1459 = vpop.f32.mrf.mxu0
    %v1460 = vadd.f32 0.0, %v1459
    %v1461 = vpop.f32.mrf.mxu0
    %v1462 = vadd.f32 0.0, %v1461
    %1463 = vdwg.mxu0
    %v1464 = vpack.c.bf16 %v1462, %v1460
    %s1465 = scalar_lea.vmem %s2, 192
    %v1466 = vld [vmem:[%s1465] sm:$0xf]
    %v1467 = vld [vmem:[%s1465 + $0x4] sm:$0xf]
    %v1468 = vld [vmem:[%s1465 + $0x8] sm:$0xf]
    %v1469 = vld [vmem:[%s1465 + $0xc] sm:$0xf]
    %v1470 = vld [vmem:[%s1465 + $0x10] sm:$0xf]
    %v1471 = vld [vmem:[%s1465 + $0x14] sm:$0xf]
    %v1472 = vld [vmem:[%s1465 + $0x18] sm:$0xf]
    %v1473 = vld [vmem:[%s1465 + $0x1c] sm:$0xf]
    %1475 = vrot.lane.b32.xlu0 %v1294, 64
    %v1476 = vpop.permute.xlu0 %1475
    %1477 = vrot.lane.b32.xlu0 %v1343, 64
    %v1478 = vpop.permute.xlu0 %1477
    %1479 = vrot.lane.b32.xlu0 %v1344, 64
    %v1480 = vpop.permute.xlu0 %1479
    %1481 = vrot.lane.b32.xlu0 %v1345, 64
    %v1482 = vpop.permute.xlu0 %1481
    %1483 = vrot.lane.b32.xlu0 %v1346, 64
    %v1484 = vpop.permute.xlu0 %1483
    %1485 = vrot.lane.b32.xlu0 %v1347, 64
    %v1486 = vpop.permute.xlu0 %1485
    %1487 = vrot.lane.b32.xlu0 %v1348, 64
    %v1488 = vpop.permute.xlu0 %1487
    %1489 = vrot.lane.b32.xlu0 %v1349, 64
    %v1490 = vpop.permute.xlu0 %1489
    %1491 = vrot.lane.b32.xlu0 %v1350, 64
    %v1492 = vpop.permute.xlu0 %1491
    %v1494 = vsel %vm295, %v1476, 0
    %v1497 = vsel %vm295, %v1478, 0
    %v1500 = vsel %vm295, %v1480, 0
    %v1503 = vsel %vm295, %v1482, 0
    %v1506 = vsel %vm295, %v1484, 0
    %v1509 = vsel %vm295, %v1486, 0
    %v1512 = vsel %vm295, %v1488, 0
    %v1515 = vsel %vm295, %v1490, 0
    %v1518 = vsel %vm295, %v1492, 0
    %1520 = vmatpush.bf16.xpose.msra.mxu0 %v1518
    %1521 = vmatpush.bf16.xpose.msra.mxu0 %v1515
    %1522 = vmatpush.bf16.xpose.msra.mxu0 %v1512
    %1523 = vmatpush.bf16.xpose.msra.mxu0 %v1509
    %1524 = vmatpush.bf16.xpose.msra.mxu0 %v1506
    %1525 = vmatpush.bf16.xpose.msra.mxu0 %v1503
    %1526 = vmatpush.bf16.xpose.msra.mxu0 %v1500
    %1527 = vmatpush.bf16.xpose.msra.mxu0 %v1497
    %1528 = vmatmul.bf16.gmra.mxu0 %v1494
    %v1529 = vpop.f32.mrf.mxu0
    %v1530 = vadd.f32 0.0, %v1529
    %v1531 = vpop.f32.mrf.mxu0
    %v1532 = vadd.f32 0.0, %v1531
    %1533 = vdwg.mxu0
    %s1535 = sor.u32 256, 120
    %1536 = vrot.lane.b32.xlu0 %v1530, %s1535
    %v1537 = vpop.permute.xlu0 %1536
    %1539 = vrot.lane.b32.xlu0 %v1532, 256
    %v1540 = vpop.permute.xlu0 %1539
    %1542 = vrot.lane.b32.xlu0 %v1290, 64
    %v1543 = vpop.permute.xlu0 %1542
    %1545 = vrot.lane.b32.xlu0 %v1291, 64
    %v1546 = vpop.permute.xlu0 %1545
    %v1548 = vsel %vm295, %v1543, 0
    %v1551 = vsel %vm295, %v1546, 0
    %1553 = vmatpush.bf16.xpose.msra.mxu0 0
    %1554 = vmatpush.bf16.xpose.msra.mxu0 0
    %1555 = vmatpush.bf16.xpose.msra.mxu0 0
    %1556 = vmatpush.bf16.xpose.msra.mxu0 0
    %1557 = vmatpush.bf16.xpose.msra.mxu0 0
    %1558 = vmatpush.bf16.xpose.msra.mxu0 0
    %1559 = vmatpush.bf16.xpose.msra.mxu0 0
    %1560 = vmatpush.bf16.xpose.msra.mxu0 %v1551
    %1561 = vmatmul.bf16.gmra.mxu0 %v1548
    %v1562 = vpop.f32.mrf.mxu0
    %v1563 = vadd.f32 %v1537, %v1562
    %v1564 = vpop.f32.mrf.mxu0
    %v1565 = vadd.f32 %v1540, %v1564
    %1566 = vdwg.mxu0
    %v1567 = vmul.f32 %v1563, 0.125
    %v1568 = vmul.f32 %v1565, 0.125
    %v1569 = vadd.f32 %v1567, %v24
    %v1570 = vadd.f32 %v1568, %v25
    %v1571 = vsel %vm368, %v1569, -inf
    %1572 = vmax.xlane.f32.xlu0 %v1571
    %v1573 = vpop.xlane.xlu0 %1572
    %v1574 = vsel %vm368, %v1570, -inf
    %1575 = vmax.xlane.f32.xlu0 %v1574
    %v1576 = vpop.xlane.xlu0 %1575
    %v1577 = vsub.f32 %v1569, %v1573
    %v1578 = vsub.f32 %v1570, %v1576
    %v1579 = vmul.f32 %v1577, 1.442695
    %v1580 = vpow.pop %v1579
    %v1581 = vmul.f32 %v1578, 1.442695
    %v1582 = vpow.pop %v1581
    %v1583 = vsel %vm368, %v1580, 0.0
    %1584 = vadd.xlane.f32.xlu0 %v1583
    %v1585 = vpop.xlane.xlu0 %1584
    %v1586 = vsel %vm368, %v1582, 0.0
    %1587 = vadd.xlane.f32.xlu0 %v1586
    %v1588 = vpop.xlane.xlu0 %1587
    %v1589 = vrcp.pop %v1585
    %v1590 = vrcp.pop %v1588
    %v1591 = vmul.f32 %v1580, %v1589
    %v1592 = vmul.f32 %v1582, %v1590
    %v1593 = vpack.c.bf16 %v1592, %v1591
    %1595 = vrot.lane.b32.xlu0 %v1446, 64
    %v1596 = vpop.permute.xlu0 %1595
    %v1599 = vsel %vm368, %v1593, 0
    %1601 = vmatpush.bf16.msra.mxu0 0
    %1602 = vmatpush.bf16.msra.mxu0 0
    %1603 = vmatpush.bf16.msra.mxu0 0
    %1604 = vmatpush.bf16.msra.mxu0 0
    %1605 = vmatpush.bf16.msra.mxu0 0
    %1606 = vmatpush.bf16.msra.mxu0 0
    %1607 = vmatpush.bf16.msra.mxu0 0
    %1608 = vmatpush.bf16.msra.mxu0 %v1596
    %1609 = vmatmul.bf16.gmra.mxu0 %v1599
    %v1610 = vpop.f32.mrf.mxu0
    %v1611 = vadd.f32 0.0, %v1610
    %v1612 = vpop.f32.mrf.mxu0
    %v1613 = vadd.f32 0.0, %v1612
    %1614 = vdwg.mxu0
    %v1615 = vpack.c.bf16 %v1613, %v1611
    %v1616 = vld [vmem:[%s1465 + $0x20] sm:$0xf]
    %v1617 = vld [vmem:[%s1465 + $0x24] sm:$0xf]
    %v1618 = vld [vmem:[%s1465 + $0x28] sm:$0xf]
    %v1619 = vld [vmem:[%s1465 + $0x2c] sm:$0xf]
    %v1620 = vld [vmem:[%s1465 + $0x30] sm:$0xf]
    %v1621 = vld [vmem:[%s1465 + $0x34] sm:$0xf]
    %v1622 = vld [vmem:[%s1465 + $0x38] sm:$0xf]
    %v1623 = vld [vmem:[%s1465 + $0x3c] sm:$0xf]
    %v1632 = vunpack.c.l.b16 %v1616
    %v1633 = vunpack.c.l.b16 %v1617
    %v1634 = vunpack.c.l.b16 %v1618
    %v1635 = vunpack.c.l.b16 %v1619
    %v1636 = vunpack.c.l.b16 %v1620
    %v1637 = vunpack.c.l.b16 %v1621
    %v1638 = vunpack.c.l.b16 %v1622
    %v1639 = vunpack.c.l.b16 %v1623
    %v1640 = vpack.c.b16 %v1633, %v1632
    %v1641 = vpack.c.b16 %v1635, %v1634
    %v1642 = vpack.c.b16 %v1637, %v1636
    %v1643 = vpack.c.b16 %v1639, %v1638
    %v1649 = vsel %vm295, %v1615, 0
    %1651 = vmatpush.bf16.msra.mxu0 0
    %1652 = vmatpush.bf16.msra.mxu0 0
    %1653 = vmatpush.bf16.msra.mxu0 0
    %1654 = vmatpush.bf16.msra.mxu0 0
    %1655 = vmatpush.bf16.msra.mxu0 %v1643
    %1656 = vmatpush.bf16.msra.mxu0 %v1642
    %1657 = vmatpush.bf16.msra.mxu0 %v1641
    %1658 = vmatpush.bf16.msra.mxu0 %v1640
    %1659 = vmatmul.bf16.gmra.mxu0 %v1649
    %v1660 = vpop.f32.mrf.mxu0
    %v1661 = vadd.f32 0.0, %v1660
    %v1662 = vpop.f32.mrf.mxu0
    %v1663 = vadd.f32 0.0, %v1662
    %1664 = vdwg.mxu0
    %v1673 = vunpack.c.l.b16 %v1466
    %v1674 = vunpack.c.l.b16 %v1467
    %v1675 = vunpack.c.l.b16 %v1468
    %v1676 = vunpack.c.l.b16 %v1469
    %v1677 = vunpack.c.l.b16 %v1470
    %v1678 = vunpack.c.l.b16 %v1471
    %v1679 = vunpack.c.l.b16 %v1472
    %v1680 = vunpack.c.l.b16 %v1473
    %v1681 = vpack.c.b16 %v1674, %v1673
    %v1682 = vpack.c.b16 %v1676, %v1675
    %v1683 = vpack.c.b16 %v1678, %v1677
    %v1684 = vpack.c.b16 %v1680, %v1679
    %v1690 = vsel %vm295, %v1464, 0
    %1692 = vmatpush.bf16.msra.mxu0 0
    %1693 = vmatpush.bf16.msra.mxu0 0
    %1694 = vmatpush.bf16.msra.mxu0 0
    %1695 = vmatpush.bf16.msra.mxu0 0
    %1696 = vmatpush.bf16.msra.mxu0 %v1684
    %1697 = vmatpush.bf16.msra.mxu0 %v1683
    %1698 = vmatpush.bf16.msra.mxu0 %v1682
    %1699 = vmatpush.bf16.msra.mxu0 %v1681
    %1700 = vmatmul.bf16.gmra.mxu0 %v1690
    %v1701 = vpop.f32.mrf.mxu0
    %v1702 = vadd.f32 %v1661, %v1701
    %v1703 = vpop.f32.mrf.mxu0
    %v1704 = vadd.f32 %v1663, %v1703
    %1705 = vdwg.mxu0
    %v1706 = vadd.f32 %v1702, %v1079
    %v1707 = vadd.f32 %v1704, %v1080
    %v1708 = vld [vmem:[%s1285 + $0x2] ss:$0 sm:$0xff]
    %v1709 = vld [vmem:[%s1285 + $0x3] ss:$0 sm:$0xff]
    %1710 = vadd.xlane.f32.xlu0 %v1706
    %v1711 = vpop.xlane.xlu0 %1710
    %1712 = vadd.xlane.f32.xlu0 %v1707
    %v1713 = vpop.xlane.xlu0 %1712
    %v1714 = vmul.f32 %v1711, %v665
    %v1715 = vmul.f32 %v1713, %v665
    %v1716 = vsub.f32 %v1706, %v1714
    %v1717 = vsub.f32 %v1707, %v1715
    %v1718 = vmul.f32 %v1716, %v1716
    %v1719 = vmul.f32 %v1717, %v1717
    %1720 = vadd.xlane.f32.xlu0 %v1718
    %v1721 = vpop.xlane.xlu0 %1720
    %1722 = vadd.xlane.f32.xlu0 %v1719
    %v1723 = vpop.xlane.xlu0 %1722
    %v1724 = vmul.f32 %v1721, %v665
    %v1725 = vmul.f32 %v1723, %v665
    %v1726 = vadd.f32 %v1724, 1e-12
    %v1727 = vadd.f32 %v1725, 1e-12
    %v1728 = vrsqrt.pop %v1726
    %v1729 = vmul.f32 %v1728, %v1726
    %v1730 = vmul.f32 %v1729, %v1728
    %v1731 = vmul.f32 0.5, %v1730
    %v1732 = vsub.f32 1.5, %v1731
    %v1733 = vmul.f32 %v1728, %v1732
    %vm1734 = vweird.f32 %v1726
    %vm1735 = vweird.f32 %v1728
    %vm1736 = vmor %vm1734, %vm1735
    %v1737 = vsel %vm1736, %v1728, %v1733
    %v1738 = vrsqrt.pop %v1727
    %v1739 = vmul.f32 %v1738, %v1727
    %v1740 = vmul.f32 %v1739, %v1738
    %v1741 = vmul.f32 0.5, %v1740
    %v1742 = vsub.f32 1.5, %v1741
    %v1743 = vmul.f32 %v1738, %v1742
    %vm1744 = vweird.f32 %v1727
    %vm1745 = vweird.f32 %v1738
    %vm1746 = vmor %vm1744, %vm1745
    %v1747 = vsel %vm1746, %v1738, %v1743
    %v1748 = vmul.f32 %v1716, %v1737
    %v1749 = vmul.f32 %v1717, %v1747
    %v1750 = vmul.f32 %v1748, %v1708
    %v1751 = vmul.f32 %v1749, %v1708
    %v1752 = vadd.f32 %v1750, %v1709
    %v1753 = vadd.f32 %v1751, %v1709
    %v1754 = vpack.c.bf16 %v1753, %v1752
    %v1755 = vld [vmem:[%s1082 + $0xc] sm:$0xff]
    %v1756 = vld [vmem:[%s1082 + $0x24] sm:$0xff]
    %v1757 = vld [vmem:[%s1082 + $0x3c] sm:$0xff]
    %v1758 = vld [vmem:[%s1082 + $0x54] sm:$0xff]
    %v1759 = vld [vmem:[%s1082 + $0x6c] sm:$0xff]
    %v1760 = vld [vmem:[%s1082 + $0x84] sm:$0xff]
    %v1761 = vld [vmem:[%s1082 + $0x9c] sm:$0xff]
    %v1762 = vld [vmem:[%s1082 + $0xb4] sm:$0xff]
    %v1763 = vld [vmem:[%s1082 + $0xcc] sm:$0xff]
    %v1764 = vld [vmem:[%s1082 + $0xe4] sm:$0xff]
    %v1765 = vld [vmem:[%s1082 + $0xfc] sm:$0xff]
    %v1766 = vld [vmem:[%s1082 + $0x114] sm:$0xff]
    %v1767 = vld [vmem:[%s1082 + $0x12c] sm:$0xff]
    %v1768 = vld [vmem:[%s1082 + $0x144] sm:$0xff]
    %v1769 = vld [vmem:[%s1082 + $0x15c] sm:$0xff]
    %v1770 = vld [vmem:[%s1082 + $0x174] sm:$0xff]
    %s1771 = scalar_lea.vmem %s1285, 4
    %v1772 = vld [vmem:[%s1771] ss:$8 sm:$0x3]
    %v1774 = vperm.slane %v1772, 0
    %v1775 = vperm.slane %v1772, 1
    %v1794 = vunpack.c.l.b16 %v1755
    %v1795 = vunpack.c.h.b16 %v1755
    %v1796 = vunpack.c.l.b16 %v1756
    %v1797 = vunpack.c.h.b16 %v1756
    %v1798 = vunpack.c.l.b16 %v1757
    %v1799 = vunpack.c.h.b16 %v1757
    %v1800 = vunpack.c.l.b16 %v1758
    %v1801 = vunpack.c.h.b16 %v1758
    %v1802 = vunpack.c.l.b16 %v1759
    %v1803 = vunpack.c.h.b16 %v1759
    %v1804 = vunpack.c.l.b16 %v1760
    %v1805 = vunpack.c.h.b16 %v1760
    %v1806 = vunpack.c.l.b16 %v1761
    %v1807 = vunpack.c.h.b16 %v1761
    %v1808 = vunpack.c.l.b16 %v1762
    %v1809 = vunpack.c.h.b16 %v1762
    %v1810 = vunpack.c.l.b16 %v1763
    %v1811 = vunpack.c.h.b16 %v1763
    %v1812 = vunpack.c.l.b16 %v1764
    %v1813 = vunpack.c.h.b16 %v1764
    %v1814 = vunpack.c.l.b16 %v1765
    %v1815 = vunpack.c.h.b16 %v1765
    %v1816 = vunpack.c.l.b16 %v1766
    %v1817 = vunpack.c.h.b16 %v1766
    %v1818 = vunpack.c.l.b16 %v1767
    %v1819 = vunpack.c.h.b16 %v1767
    %v1820 = vunpack.c.l.b16 %v1768
    %v1821 = vunpack.c.h.b16 %v1768
    %v1822 = vunpack.c.l.b16 %v1769
    %v1823 = vunpack.c.h.b16 %v1769
    %v1824 = vunpack.c.l.b16 %v1770
    %v1825 = vunpack.c.h.b16 %v1770
    %v1826 = vpack.c.b16 %v1796, %v1794
    %v1827 = vpack.c.b16 %v1797, %v1795
    %v1828 = vpack.c.b16 %v1800, %v1798
    %v1829 = vpack.c.b16 %v1801, %v1799
    %v1830 = vpack.c.b16 %v1804, %v1802
    %v1831 = vpack.c.b16 %v1805, %v1803
    %v1832 = vpack.c.b16 %v1808, %v1806
    %v1833 = vpack.c.b16 %v1809, %v1807
    %v1834 = vpack.c.b16 %v1812, %v1810
    %v1835 = vpack.c.b16 %v1813, %v1811
    %v1836 = vpack.c.b16 %v1816, %v1814
    %v1837 = vpack.c.b16 %v1817, %v1815
    %v1838 = vpack.c.b16 %v1820, %v1818
    %v1839 = vpack.c.b16 %v1821, %v1819
    %v1840 = vpack.c.b16 %v1824, %v1822
    %v1841 = vpack.c.b16 %v1825, %v1823
    %1858 = vmatpush.bf16.msra.mxu0 %v1840
    %1859 = vmatpush.bf16.msra.mxu0 %v1838
    %1860 = vmatpush.bf16.msra.mxu0 %v1836
    %1861 = vmatpush.bf16.msra.mxu0 %v1834
    %1862 = vmatpush.bf16.msra.mxu0 %v1832
    %1863 = vmatpush.bf16.msra.mxu0 %v1830
    %1864 = vmatpush.bf16.msra.mxu0 %v1828
    %1865 = vmatpush.bf16.msra.mxu0 %v1826
    %1866 = vmatmul.bf16.gmra.mxu0 %v1754
    %v1867 = vpop.f32.mrf.mxu0
    %v1868 = vadd.f32 %v1774, %v1867
    %v1869 = vpop.f32.mrf.mxu0
    %v1870 = vadd.f32 %v1774, %v1869
    %1871 = vdwg.mxu0
    %1872 = vmatpush.bf16.msra.mxu0 %v1841
    %1873 = vmatpush.bf16.msra.mxu0 %v1839
    %1874 = vmatpush.bf16.msra.mxu0 %v1837
    %1875 = vmatpush.bf16.msra.mxu0 %v1835
    %1876 = vmatpush.bf16.msra.mxu0 %v1833
    %1877 = vmatpush.bf16.msra.mxu0 %v1831
    %1878 = vmatpush.bf16.msra.mxu0 %v1829
    %1879 = vmatpush.bf16.msra.mxu0 %v1827
    %1880 = vmatmul.bf16.gmra.mxu0 %v1754
    %v1881 = vpop.f32.mrf.mxu0
    %v1882 = vadd.f32 %v1775, %v1881
    %v1883 = vpop.f32.mrf.mxu0
    %v1884 = vadd.f32 %v1775, %v1883
    %1885 = vdwg.mxu0
    %v1886 = vmul.f32 %v1868, %v1868
    %v1887 = vmul.f32 %v1882, %v1882
    %v1888 = vmul.f32 %v1870, %v1870
    %v1889 = vmul.f32 %v1884, %v1884
    %v1890 = vmul.f32 %v1868, %v1886
    %v1891 = vmul.f32 %v1882, %v1887
    %v1892 = vmul.f32 %v1870, %v1888
    %v1893 = vmul.f32 %v1884, %v1889
    %v1894 = vmul.f32 %v1890, 0.044715
    %v1895 = vmul.f32 %v1891, 0.044715
    %v1896 = vmul.f32 %v1892, 0.044715
    %v1897 = vmul.f32 %v1893, 0.044715
    %v1898 = vadd.f32 %v1868, %v1894
    %v1899 = vadd.f32 %v1882, %v1895
    %v1900 = vadd.f32 %v1870, %v1896
    %v1901 = vadd.f32 %v1884, %v1897
    %v1902 = vmul.f32 %v1898, 0.7978846
    %v1903 = vmul.f32 %v1899, 0.7978846
    %v1904 = vmul.f32 %v1900, 0.7978846
    %v1905 = vmul.f32 %v1901, 0.7978846
    %v1906 = vtanh.pop %v1902
    %v1907 = vtanh.pop %v1903
    %v1908 = vtanh.pop %v1904
    %v1909 = vtanh.pop %v1905
    %v1910 = vadd.f32 %v1906, 1.0
    %v1911 = vadd.f32 %v1907, 1.0
    %v1912 = vadd.f32 %v1908, 1.0
    %v1913 = vadd.f32 %v1909, 1.0
    %v1914 = vmul.f32 %v1910, 0.5
    %v1915 = vmul.f32 %v1911, 0.5
    %v1916 = vmul.f32 %v1912, 0.5
    %v1917 = vmul.f32 %v1913, 0.5
    %v1918 = vmul.f32 %v1868, %v1914
    %v1919 = vmul.f32 %v1882, %v1915
    %v1920 = vmul.f32 %v1870, %v1916
    %v1921 = vmul.f32 %v1884, %v1917
    %v1922 = vpack.c.bf16 %v1920, %v1918
    %v1923 = vpack.c.bf16 %v1921, %v1919
    %v1924 = vld [vmem:[%s1465 + $0x40] sm:$0xf]
    %v1925 = vld [vmem:[%s1465 + $0x44] sm:$0xf]
    %v1926 = vld [vmem:[%s1465 + $0x48] sm:$0xf]
    %v1927 = vld [vmem:[%s1465 + $0x4c] sm:$0xf]
    %v1928 = vld [vmem:[%s1465 + $0x50] sm:$0xf]
    %v1929 = vld [vmem:[%s1465 + $0x54] sm:$0xf]
    %v1930 = vld [vmem:[%s1465 + $0x58] sm:$0xf]
    %v1931 = vld [vmem:[%s1465 + $0x5c] sm:$0xf]
    %v1932 = vld [vmem:[%s1465 + $0x60] sm:$0xf]
    %v1933 = vld [vmem:[%s1465 + $0x64] sm:$0xf]
    %v1934 = vld [vmem:[%s1465 + $0x68] sm:$0xf]
    %v1935 = vld [vmem:[%s1465 + $0x6c] sm:$0xf]
    %v1936 = vld [vmem:[%s1465 + $0x70] sm:$0xf]
    %v1937 = vld [vmem:[%s1465 + $0x74] sm:$0xf]
    %v1938 = vld [vmem:[%s1465 + $0x78] sm:$0xf]
    %v1939 = vld [vmem:[%s1465 + $0x7c] sm:$0xf]
    %v1940 = vld [vmem:[%s1465 + $0x80] sm:$0xf]
    %v1941 = vld [vmem:[%s1465 + $0x84] sm:$0xf]
    %v1942 = vld [vmem:[%s1465 + $0x88] sm:$0xf]
    %v1943 = vld [vmem:[%s1465 + $0x8c] sm:$0xf]
    %v1944 = vld [vmem:[%s1465 + $0x90] sm:$0xf]
    %v1945 = vld [vmem:[%s1465 + $0x94] sm:$0xf]
    %v1946 = vld [vmem:[%s1465 + $0x98] sm:$0xf]
    %v1947 = vld [vmem:[%s1465 + $0x9c] sm:$0xf]
    %v1948 = vld [vmem:[%s1465 + $0xa0] sm:$0xf]
    %v1949 = vld [vmem:[%s1465 + $0xa4] sm:$0xf]
    %v1950 = vld [vmem:[%s1465 + $0xa8] sm:$0xf]
    %v1951 = vld [vmem:[%s1465 + $0xac] sm:$0xf]
    %v1952 = vld [vmem:[%s1465 + $0xb0] sm:$0xf]
    %v1953 = vld [vmem:[%s1465 + $0xb4] sm:$0xf]
    %v1954 = vld [vmem:[%s1465 + $0xb8] sm:$0xf]
    %v1955 = vld [vmem:[%s1465 + $0xbc] sm:$0xf]
    %v1956 = vld [vmem:[%s1285 + $0x5] ss:$0 sm:$0xff]
    %v1989 = vunpack.c.l.b16 %v1924
    %v1990 = vunpack.c.l.b16 %v1925
    %v1991 = vunpack.c.l.b16 %v1926
    %v1992 = vunpack.c.l.b16 %v1927
    %v1993 = vunpack.c.l.b16 %v1928
    %v1994 = vunpack.c.l.b16 %v1929
    %v1995 = vunpack.c.l.b16 %v1930
    %v1996 = vunpack.c.l.b16 %v1931
    %v1997 = vunpack.c.l.b16 %v1932
    %v1998 = vunpack.c.l.b16 %v1933
    %v1999 = vunpack.c.l.b16 %v1934
    %v2000 = vunpack.c.l.b16 %v1935
    %v2001 = vunpack.c.l.b16 %v1936
    %v2002 = vunpack.c.l.b16 %v1937
    %v2003 = vunpack.c.l.b16 %v1938
    %v2004 = vunpack.c.l.b16 %v1939
    %v2005 = vunpack.c.l.b16 %v1940
    %v2006 = vunpack.c.l.b16 %v1941
    %v2007 = vunpack.c.l.b16 %v1942
    %v2008 = vunpack.c.l.b16 %v1943
    %v2009 = vunpack.c.l.b16 %v1944
    %v2010 = vunpack.c.l.b16 %v1945
    %v2011 = vunpack.c.l.b16 %v1946
    %v2012 = vunpack.c.l.b16 %v1947
    %v2013 = vunpack.c.l.b16 %v1948
    %v2014 = vunpack.c.l.b16 %v1949
    %v2015 = vunpack.c.l.b16 %v1950
    %v2016 = vunpack.c.l.b16 %v1951
    %v2017 = vunpack.c.l.b16 %v1952
    %v2018 = vunpack.c.l.b16 %v1953
    %v2019 = vunpack.c.l.b16 %v1954
    %v2020 = vunpack.c.l.b16 %v1955
    %v2021 = vpack.c.b16 %v1990, %v1989
    %v2022 = vpack.c.b16 %v1992, %v1991
    %v2023 = vpack.c.b16 %v1994, %v1993
    %v2024 = vpack.c.b16 %v1996, %v1995
    %v2025 = vpack.c.b16 %v1998, %v1997
    %v2026 = vpack.c.b16 %v2000, %v1999
    %v2027 = vpack.c.b16 %v2002, %v2001
    %v2028 = vpack.c.b16 %v2004, %v2003
    %v2029 = vpack.c.b16 %v2006, %v2005
    %v2030 = vpack.c.b16 %v2008, %v2007
    %v2031 = vpack.c.b16 %v2010, %v2009
    %v2032 = vpack.c.b16 %v2012, %v2011
    %v2033 = vpack.c.b16 %v2014, %v2013
    %v2034 = vpack.c.b16 %v2016, %v2015
    %v2035 = vpack.c.b16 %v2018, %v2017
    %v2036 = vpack.c.b16 %v2020, %v2019
    %2053 = vmatpush.bf16.msra.mxu0 %v2028
    %2054 = vmatpush.bf16.msra.mxu0 %v2027
    %2055 = vmatpush.bf16.msra.mxu0 %v2026
    %2056 = vmatpush.bf16.msra.mxu0 %v2025
    %2057 = vmatpush.bf16.msra.mxu0 %v2024
    %2058 = vmatpush.bf16.msra.mxu0 %v2023
    %2059 = vmatpush.bf16.msra.mxu0 %v2022
    %2060 = vmatpush.bf16.msra.mxu0 %v2021
    %2061 = vmatmul.bf16.gmra.mxu0 %v1922
    %v2062 = vpop.f32.mrf.mxu0
    %v2063 = vadd.f32 %v1956, %v2062
    %v2064 = vpop.f32.mrf.mxu0
    %v2065 = vadd.f32 %v1956, %v2064
    %2066 = vdwg.mxu0
    %2067 = vmatpush.bf16.msra.mxu0 %v2036
    %2068 = vmatpush.bf16.msra.mxu0 %v2035
    %2069 = vmatpush.bf16.msra.mxu0 %v2034
    %2070 = vmatpush.bf16.msra.mxu0 %v2033
    %2071 = vmatpush.bf16.msra.mxu0 %v2032
    %2072 = vmatpush.bf16.msra.mxu0 %v2031
    %2073 = vmatpush.bf16.msra.mxu0 %v2030
    %2074 = vmatpush.bf16.msra.mxu0 %v2029
    %2075 = vmatmul.bf16.gmra.mxu0 %v1923
    %v2076 = vpop.f32.mrf.mxu0
    %v2077 = vadd.f32 %v2063, %v2076
    %v2078 = vpop.f32.mrf.mxu0
    %v2079 = vadd.f32 %v2065, %v2078
    %2080 = vdwg.mxu0
    %v2081 = vadd.f32 %v2077, %v1752
    %v2082 = vadd.f32 %v2079, %v1753
    %v2083 = vld [vmem:[%s1285 + $0x6] ss:$0 sm:$0xff]
    %v2084 = vld [vmem:[%s1285 + $0x7] ss:$0 sm:$0xff]
    %2085 = vadd.xlane.f32.xlu0 %v2081
    %v2086 = vpop.xlane.xlu0 %2085
    %2087 = vadd.xlane.f32.xlu0 %v2082
    %v2088 = vpop.xlane.xlu0 %2087
    %v2089 = vmul.f32 %v2086, %v665
    %v2090 = vmul.f32 %v2088, %v665
    %v2091 = vsub.f32 %v2081, %v2089
    %v2092 = vsub.f32 %v2082, %v2090
    %v2093 = vmul.f32 %v2091, %v2091
    %v2094 = vmul.f32 %v2092, %v2092
    %2095 = vadd.xlane.f32.xlu0 %v2093
    %v2096 = vpop.xlane.xlu0 %2095
    %2097 = vadd.xlane.f32.xlu0 %v2094
    %v2098 = vpop.xlane.xlu0 %2097
    %v2099 = vmul.f32 %v2096, %v665
    %v2100 = vmul.f32 %v2098, %v665
    %v2101 = vadd.f32 %v2099, 1e-12
    %v2102 = vadd.f32 %v2100, 1e-12
    %v2103 = vrsqrt.pop %v2101
    %v2104 = vmul.f32 %v2103, %v2101
    %v2105 = vmul.f32 %v2104, %v2103
    %v2106 = vmul.f32 0.5, %v2105
    %v2107 = vsub.f32 1.5, %v2106
    %v2108 = vmul.f32 %v2103, %v2107
    %vm2109 = vweird.f32 %v2101
    %vm2110 = vweird.f32 %v2103
    %vm2111 = vmor %vm2109, %vm2110
    %v2112 = vsel %vm2111, %v2103, %v2108
    %v2113 = vrsqrt.pop %v2102
    %v2114 = vmul.f32 %v2113, %v2102
    %v2115 = vmul.f32 %v2114, %v2113
    %v2116 = vmul.f32 0.5, %v2115
    %v2117 = vsub.f32 1.5, %v2116
    %v2118 = vmul.f32 %v2113, %v2117
    %vm2119 = vweird.f32 %v2102
    %vm2120 = vweird.f32 %v2113
    %vm2121 = vmor %vm2119, %vm2120
    %v2122 = vsel %vm2121, %v2113, %v2118
    %v2123 = vmul.f32 %v2091, %v2112
    %v2124 = vmul.f32 %v2092, %v2122
    %v2125 = vmul.f32 %v2123, %v2083
    %v2126 = vmul.f32 %v2124, %v2083
    %v2127 = vadd.f32 %v2125, %v2084
    %v2128 = vadd.f32 %v2126, %v2084
    %v2130 = vsel %vm368, %v26, 0
    %2132 = vmatpush.msra.mxu0 0.0
    %2133 = vmatpush.msra.mxu0 0.0
    %2134 = vmatpush.msra.mxu0 0.0
    %2135 = vmatpush.msra.mxu0 0.0
    %2136 = vmatpush.msra.mxu0 0.0
    %2137 = vmatpush.msra.mxu0 0.0
    %2138 = vmatpush.msra.mxu0 0.0
    %2139 = vmatpush.msra.mxu0 0.0
    %2140 = vmatpush.msra.mxu0 0.0
    %2141 = vmatpush.msra.mxu0 0.0
    %2142 = vmatpush.msra.mxu0 0.0
    %2143 = vmatpush.msra.mxu0 0.0
    %2144 = vmatpush.msra.mxu0 0.0
    %2145 = vmatpush.msra.mxu0 0.0
    %2146 = vmatpush.msra.mxu0 %v2128
    %2147 = vmatpush.msra.mxu0 %v2127
    %2148 = vmatmul.f32.gmra.mxu0 %v2130
    %v2149 = vpop.f32.mrf.mxu0
    %v2150 = vadd.f32 0.0, %v2149
    %2151 = vdwg.mxu0
    %v2152 = vld [vmem:[%s4] sm:$0xff]
    %v2153 = vld [vmem:[%s4 + $0x8] sm:$0xff]
    %v2154 = vld [vmem:[%s4 + $0x10] sm:$0xff]
    %v2155 = vld [vmem:[%s4 + $0x18] sm:$0xff]
    %v2156 = vld [vmem:[%s4 + $0x20] sm:$0xff]
    %v2157 = vld [vmem:[%s4 + $0x28] sm:$0xff]
    %v2158 = vld [vmem:[%s4 + $0x30] sm:$0xff]
    %v2159 = vld [vmem:[%s4 + $0x38] sm:$0xff]
    %v2160 = vld [vmem:[%s4 + $0x40] sm:$0xff]
    %v2161 = vld [vmem:[%s4 + $0x48] sm:$0xff]
    %v2162 = vld [vmem:[%s4 + $0x50] sm:$0xff]
    %v2163 = vld [vmem:[%s4 + $0x58] sm:$0xff]
    %v2164 = vld [vmem:[%s4 + $0x60] sm:$0xff]
    %v2165 = vld [vmem:[%s4 + $0x68] sm:$0xff]
    %v2166 = vld [vmem:[%s4 + $0x70] sm:$0xff]
    %v2167 = vld [vmem:[%s4 + $0x78] sm:$0xff]
    %v2168 = vld [vmem:[%s4 + $0x80] sm:$0x1]
    %v2169 = vperm.slane %v2168, 0
    %2170 = vmatpush.msra.mxu0 %v2167
    %2171 = vmatpush.msra.mxu0 %v2166
    %2172 = vmatpush.msra.mxu0 %v2165
    %2173 = vmatpush.msra.mxu0 %v2164
    %2174 = vmatpush.msra.mxu0 %v2163
    %2175 = vmatpush.msra.mxu0 %v2162
    %2176 = vmatpush.msra.mxu0 %v2161
    %2177 = vmatpush.msra.mxu0 %v2160
    %2178 = vmatpush.msra.mxu0 %v2159
    %2179 = vmatpush.msra.mxu0 %v2158
    %2180 = vmatpush.msra.mxu0 %v2157
    %2181 = vmatpush.msra.mxu0 %v2156
    %2182 = vmatpush.msra.mxu0 %v2155
    %2183 = vmatpush.msra.mxu0 %v2154
    %2184 = vmatpush.msra.mxu0 %v2153
    %2185 = vmatpush.msra.mxu0 %v2152
    %2186 = vmatmul.f32.gmra.mxu0 %v2150
    %v2187 = vpop.f32.mrf.mxu0
    %v2188 = vadd.f32 %v2169, %v2187
    %2189 = vdwg.mxu0
    %vm2190 = vcmask 25600
    %v2191 = vsel %vm2190, %v2188, -inf
    %2192 = vmax.xlane.f32.xlu0 %v2191
    %v2193 = vpop.xlane.xlu0 %2192
    %v2194 = vsub.f32 %v2188, %v2193
    %v2195 = vmul.f32 %v2194, 1.442695
    %v2196 = vpow.pop %v2195
    %v2197 = vsel %vm2190, %v2196, 0.0
    %2198 = vadd.xlane.f32.xlu0 %v2197
    %v2199 = vpop.xlane.xlu0 %2198
    %v2200 = vrcp.pop %v2199
    %v2201 = vmul.f32 %v2199, %v2200
    %v2202 = vsub.f32 1.0, %v2201
    %v2203 = vmul.f32 %v2200, %v2202
    %v2204 = vadd.f32 %v2200, %v2203
    %vm2205 = vweird.f32 %v2199
    %vm2206 = vweird.f32 %v2200
    %vm2207 = vmor %vm2205, %vm2206
    %v2208 = vsel %vm2207, %v2200, %v2204
    %v2209 = vand.u32 2147483647, %v2199
    %vm2210 = vcmp.eq.f32.partialorder %v2209, 8.507059e+37
    %v2211 = vand.u32 %v2199, 2147483648
    %v2212 = vor.u32 1.1754944e-38, %v2211
    %v2213 = vsel %vm2210, %v2212, %v2208
    %v2214 = vmul.f32 %v2196, %v2213
    %2215 = vst.msk [vmem:[#allocation2] sm:$0x3] %vm2190, %v2214
    // Predicated region
    $region22: #{xlnet_multilabel_forward.1} parent=1 // pred_check
      _
    $region23: #{xlnet_multilabel_forward.1} parent=1 // pred_check_branch
      %2217 = sbr.rel (0) target = $region25
    $region24: #{xlnet_multilabel_forward.1} parent=1 // pred_region
      %2219 = vsyncadd [#allocation3], 0
      %s2221 = sshll.u32 [#allocation2], 4
      %s2222 = int_to_ptr.vmem [resolvable:$true] %s2221
      %s2223 = sshll.u32 %s5, 4
      %s2224 = int_to_ptr.hbm [resolvable:$true] %s2223
      %2226 = dma.vmem_to_hbm [thread:$0]  %s2222, 32, %s2224, [#allocation3]
    $region25: #{xlnet_multilabel_forward.1} parent=1 // pred_fallthru
      _
    // Predicated region
    $region26: #{xlnet_multilabel_forward.1} parent=1 // pred_check
      _
    $region27: #{xlnet_multilabel_forward.1} parent=1 // pred_check_branch
      %2228 = sbr.rel (0) target = $region29
    $region28: #{xlnet_multilabel_forward.1} parent=1 // pred_region
      %2230 = dma.done [#allocation3], 32
    $region29: #{xlnet_multilabel_forward.1} parent=1 // pred_fallthru
      _
    %2231 = vsyncpa [#allocation3], 1

</llo_original>
